<compile_context>
chip_gen: v7x
topology: tpu7x:2x2x1
jax: 0.10.0
libtpu: 0.0.40
codegen_flags: <defaults>
</compile_context>

<pallas_src>
import functools
import math

import jax
import jax.numpy as jnp
from jax.experimental import pallas as pl
from jax.experimental.pallas import tpu as pltpu


# ----------------------------------------------------------------------------
# Pallas kernels
# ----------------------------------------------------------------------------
def encoder_stack_kernel(src_ref, pos_ref,
                         wqk_ref, bqk_ref, wv_ref, bv_ref,
                         wo_ref, bo_ref,
                         w1_ref, b1_ref, w2_ref, b2_ref,
                         g1_ref, be1_ref, g2_ref, be2_ref,
                         *rest, nhead, has_mask, exp_dtype, eps=1e-5):
    if has_mask:
        mask_ref, o_ref, x_res = rest
    else:
        mask_ref = None
        o_ref, x_res = rest

    layer = pl.program_id(1)
    n_layers = pl.num_programs(1)
    _, S, D = src_ref.shape
    hd = D // nhead

    # Layer 0: pull this batch element's activations into the resident scratch.
    # NOTE: correctness of x_res relies on the layer axis being the innermost,
    # sequential ("arbitrary") grid axis and on this re-init at layer == 0.
    @pl.when(layer == 0)
    def _():
        x_res[...] = src_ref[0].astype(jnp.float32)

    x = x_res[...]                                    # (S, D) f32, VMEM-resident
    p = pos_ref[0].astype(jnp.float32)                # (S, D)

    # ---- self-attention ------------------------------------------------------
    # Fused Q/K projection on (x + pos); V projection on x.
    # 1/sqrt(hd) is folded into wqk[:, :D] / bqk[:, :D] on the host.
    xp = (x + p).astype(jnp.bfloat16)
    qk = jnp.dot(xp, wqk_ref[layer],
                 preferred_element_type=jnp.float32) + bqk_ref[layer]   # (S, 2D)
    v = jnp.dot(x.astype(jnp.bfloat16), wv_ref[layer],
                preferred_element_type=jnp.float32) + bv_ref[layer]     # (S, D)

    qkb = qk.astype(jnp.bfloat16)
    vb = v.astype(jnp.bfloat16)

    # Heads in a short unrolled loop of 2-D matmuls; the head-concat is folded
    # into the output projection (wo packed (L, H, hd, D)), so no stack/concat
    # relayouts and no post-concat matmul.
    attn = jnp.zeros((S, D), jnp.float32)
    for h in range(nhead):
        qh = qkb[:, h * hd:(h + 1) * hd]              # (S, hd)
        kh = qkb[:, D + h * hd:D + (h + 1) * hd]      # (S, hd)
        vh = vb[:, h * hd:(h + 1) * hd]               # (S, hd)

        s = jax.lax.dot_general(qh, kh, (((1,), (1,)), ((), ())),
                                preferred_element_type=jnp.float32)     # (S, S)
        if has_mask:
            s = s + mask_ref[0]                       # combined mask, single add
        s = s - jnp.max(s, axis=-1, keepdims=True)

        pr = jnp.exp(s.astype(exp_dtype))             # bf16 exp on v6e/v7x
        denom = jnp.sum(pr, axis=-1, keepdims=True, dtype=jnp.float32)
        inv = pl.reciprocal(denom, approx=True)       # EUP slot
        a = (pr * inv.astype(pr.dtype)).astype(jnp.bfloat16)

        ctx = jnp.dot(a, vh, preferred_element_type=jnp.float32)        # (S, hd)
        attn = attn + jnp.dot(ctx.astype(jnp.bfloat16), wo_ref[layer, h],
                              preferred_element_type=jnp.float32)       # (S, D)
    attn = attn + bo_ref[layer]

    # residual + LayerNorm 1  (dropout == identity in eval mode)
    y = x + attn
    mu = jnp.mean(y, axis=-1, keepdims=True)
    var = jnp.mean((y - mu) ** 2, axis=-1, keepdims=True)
    y = (y - mu) * jax.lax.rsqrt(var + eps) * g1_ref[layer] + be1_ref[layer]

    # ---- FFN -----------------------------------------------------------------
    h1 = jnp.dot(y.astype(jnp.bfloat16), w1_ref[layer],
                 preferred_element_type=jnp.float32) + b1_ref[layer]
    h1 = jnp.maximum(h1, 0.0).astype(jnp.bfloat16)    # ReLU output directly bf16
    h2 = jnp.dot(h1, w2_ref[layer],
                 preferred_element_type=jnp.float32) + b2_ref[layer]

    # residual + LayerNorm 2
    z = y + h2
    mu = jnp.mean(z, axis=-1, keepdims=True)
    var = jnp.mean((z - mu) ** 2, axis=-1, keepdims=True)
    z = (z - mu) * jax.lax.rsqrt(var + eps) * g2_ref[layer] + be2_ref[layer]

    @pl.when(layer < n_layers - 1)                    # skip the dead last store
    def _():
        x_res[...] = z

    @pl.when(layer == n_layers - 1)
    def _():
        o_ref[0] = z.astype(o_ref.dtype)


def layernorm_kernel(x_ref, g_ref, b_ref, o_ref, *, eps=1e-5):
    x = x_ref[...].astype(jnp.float32)
    mu = jnp.mean(x, axis=-1, keepdims=True)
    var = jnp.mean((x - mu) ** 2, axis=-1, keepdims=True)
    o_ref[...] = ((x - mu) * jax.lax.rsqrt(var + eps)
                  * g_ref[...] + b_ref[...]).astype(o_ref.dtype)


# ----------------------------------------------------------------------------
# Host-side weight preparation (transpose / fuse QK / fold scale / head-pack wo)
# ----------------------------------------------------------------------------
def _prepare_stacked_params(layer_params, d_model, nhead):
    hd = d_model // nhead
    scale = 1.0 / math.sqrt(hd)
    cols = {k: [] for k in ("wqk", "bqk", "wv", "bv", "wo", "bo",
                            "w1", "b1", "w2", "b2", "g1", "be1", "g2", "be2")}
    for prm in layer_params:
        in_w = jnp.asarray(prm["in_w"], jnp.float32)              # (3D, D)
        in_b = jnp.asarray(prm["in_b"], jnp.float32).reshape(1, 3 * d_model)
        wq_t = in_w[:d_model].T * scale                           # scale folded
        wk_t = in_w[d_model:2 * d_model].T
        wv_t = in_w[2 * d_model:].T
        bq = in_b[:, :d_model] * scale
        bk = in_b[:, d_model:2 * d_model]
        bv = in_b[:, 2 * d_model:]
        cols["wqk"].append(jnp.concatenate([wq_t, wk_t], axis=1))  # (D, 2D)
        cols["bqk"].append(jnp.concatenate([bq, bk], axis=1))      # (1, 2D)
        cols["wv"].append(wv_t)
        cols["bv"].append(bv)
        wo_t = jnp.asarray(prm["out_w"], jnp.float32).T            # (D_in, D_out)
        cols["wo"].append(wo_t.reshape(nhead, hd, d_model))        # head-packed
        cols["bo"].append(jnp.asarray(prm["out_b"], jnp.float32).reshape(1, d_model))
        cols["w1"].append(jnp.asarray(prm["w1"], jnp.float32).T)   # (D, dff)
        cols["b1"].append(jnp.asarray(prm["b1"], jnp.float32).reshape(1, -1))
        cols["w2"].append(jnp.asarray(prm["w2"], jnp.float32).T)   # (dff, D)
        cols["b2"].append(jnp.asarray(prm["b2"], jnp.float32).reshape(1, d_model))
        cols["g1"].append(jnp.asarray(prm["g1"], jnp.float32).reshape(1, d_model))
        cols["be1"].append(jnp.asarray(prm["be1"], jnp.float32).reshape(1, d_model))
        cols["g2"].append(jnp.asarray(prm["g2"], jnp.float32).reshape(1, d_model))
        cols["be2"].append(jnp.asarray(prm["be2"], jnp.float32).reshape(1, d_model))

    bf16_keys = ("wqk", "wv", "wo", "w1", "w2")
    return {k: jnp.stack(vs, axis=0).astype(
                jnp.bfloat16 if k in bf16_keys else jnp.float32)
            for k, vs in cols.items()}


def _softmax_exp_dtype():
    """bf16 exp on v6e/v7x (bf16 EUP); keep f32 elsewhere (v5e has no bf16 EUP)."""
    try:
        kind = jax.devices()[0].device_kind.lower()
    except Exception:
        return jnp.float32
    if ("v6" in kind) or ("v7" in kind) or ("7x" in kind):
        return jnp.bfloat16
    return jnp.float32


# ----------------------------------------------------------------------------
# Wrappers
# ----------------------------------------------------------------------------
def encoder_stack_apply(x_bsd, pos_bsd, stacked, nhead, mask_bss=None, *,
                        exp_dtype):
    B, S, D = x_bsd.shape
    L = stacked["wqk"].shape[0]
    dff = stacked["w1"].shape[2]
    hd = D // nhead
    has_mask = mask_bss is not None

    act_spec = pl.BlockSpec((1, S, D), lambda b, l: (b, 0, 0))

    # Weights: full-L blocks with a constant index map -> DMA'd once per call
    # and resident in VMEM for the whole grid; kernel indexes with `layer`.
    def full_spec(arr):
        nd = arr.ndim
        return pl.BlockSpec(arr.shape, lambda b, l, _n=nd: (0,) * _n)

    weight_keys = ("wqk", "bqk", "wv", "bv", "wo", "bo",
                   "w1", "b1", "w2", "b2", "g1", "be1", "g2", "be2")
    in_specs = [act_spec, act_spec] + [full_spec(stacked[k]) for k in weight_keys]
    operands = [x_bsd, pos_bsd] + [stacked[k] for k in weight_keys]
    if has_mask:
        in_specs.append(pl.BlockSpec((1, S, S), lambda b, l: (b, 0, 0)))
        operands.append(mask_bss)

    flops = 2 * B * L * (S * D * (2 * D)            # fused QK projection
                         + 2 * S * D * D            # V projection + out-proj
                         + 2 * nhead * S * S * hd   # QK^T and AV
                         + 2 * S * D * dff)         # FFN
    transcendentals = B * L * nhead * S * S
    weight_bytes = sum(int(v.size) * v.dtype.itemsize for v in stacked.values())
    bytes_accessed = weight_bytes + 3 * int(x_bsd.size) * x_bsd.dtype.itemsize
    if has_mask:
        bytes_accessed += int(mask_bss.size) * mask_bss.dtype.itemsize

    kernel = functools.partial(encoder_stack_kernel, nhead=nhead,
                               has_mask=has_mask, exp_dtype=exp_dtype)

    return pl.pallas_call(
        kernel,
        out_shape=jax.ShapeDtypeStruct((B, S, D), x_bsd.dtype),
        grid=(B, L),
        in_specs=in_specs,
        out_specs=act_spec,
        scratch_shapes=[pltpu.VMEM((S, D), jnp.float32)],
        compiler_params=pltpu.CompilerParams(
            dimension_semantics=("parallel", "arbitrary"),
            vmem_limit_bytes=48 * 1024 * 1024),
        cost_estimate=pl.CostEstimate(flops=flops,
                                      transcendentals=transcendentals,
                                      bytes_accessed=bytes_accessed),
    )(*operands)


def layernorm_pallas(x_sbd, gamma, beta, block_rows=256):
    S, B, D = x_sbd.shape
    N = S * B
    x2 = x_sbd.reshape(N, D)
    g = jnp.asarray(gamma, jnp.float32).reshape(1, D)
    b = jnp.asarray(beta, jnp.float32).reshape(1, D)
    bn = min(block_rows, N)
    out = pl.pallas_call(
        layernorm_kernel,
        out_shape=jax.ShapeDtypeStruct((N, D), x_sbd.dtype),
        grid=(pl.cdiv(N, bn),),
        in_specs=[pl.BlockSpec((bn, D), lambda i: (i, 0)),
                  pl.BlockSpec((1, D), lambda i: (0, 0)),
                  pl.BlockSpec((1, D), lambda i: (0, 0))],
        out_specs=pl.BlockSpec((bn, D), lambda i: (i, 0)),
        compiler_params=pltpu.CompilerParams(
            dimension_semantics=("parallel",)),
    )(x2, g, b)
    return out.reshape(S, B, D)


def transformer_encoder(src, pos, layer_params, nhead,
                        mask=None, src_key_padding_mask=None, final_norm=None):
    """src, pos: (S, B, D).  Mirrors TransformerEncoder.forward (eval mode)."""
    S, B, D = src.shape
    assert D % nhead == 0
    x = jnp.transpose(src, (1, 0, 2))                 # (B, S, D)
    p = jnp.zeros_like(x) if pos is None else jnp.transpose(pos, (1, 0, 2))

    stacked = _prepare_stacked_params(layer_params, D, nhead)

    # Pre-combine attn mask + key padding mask into a single additive (B,S,S).
    mask_bss = None
    if (mask is not None) or (src_key_padding_mask is not None):
        am = jnp.zeros((S, S), jnp.float32)
        if mask is not None:
            am = (jnp.where(mask, -1e9, 0.0) if mask.dtype == jnp.bool_
                  else mask).astype(jnp.float32)
        if src_key_padding_mask is not None:
            kp = jnp.where(src_key_padding_mask, -1e9, 0.0).astype(jnp.float32)
            mask_bss = am[None, :, :] + kp[:, None, :]
        else:
            mask_bss = jnp.broadcast_to(am[None, :, :], (B, S, S))

    out_bsd = encoder_stack_apply(x, p, stacked, nhead, mask_bss,
                                  exp_dtype=_softmax_exp_dtype())
    out = jnp.transpose(out_bsd, (1, 0, 2))           # back to (S, B, D)
    if final_norm is not None:                        # optional self.norm
        out = layernorm_pallas(out, final_norm["gamma"], final_norm["beta"])
    return out


# ----------------------------------------------------------------------------
# Pure-JAX reference (mirrors the PyTorch forward, eval mode)
# ----------------------------------------------------------------------------
def _layer_norm_ref(x, g, b, eps=1e-5):
    mu = jnp.mean(x, axis=-1, keepdims=True)
    var = jnp.mean((x - mu) ** 2, axis=-1, keepdims=True)
    return (x - mu) * jax.lax.rsqrt(var + eps) * g.reshape(-1) + b.reshape(-1)


def transformer_encoder_ref(src, pos, layer_params, nhead, attn_bias=None,
                            final_norm=None):
    S, B, D = src.shape
    hd = D // nhead
    scale = 1.0 / math.sqrt(hd)
    x = src.astype(jnp.float32)
    p = jnp.zeros_like(x) if pos is None else pos.astype(jnp.float32)
    for prm in layer_params:
        in_w = prm["in_w"]
        in_b = prm["in_b"].reshape(-1)
        xp = x + p
        q = xp @ in_w[:D].T + in_b[:D]
        k = xp @ in_w[D:2 * D].T + in_b[D:2 * D]
        v = x @ in_w[2 * D:].T + in_b[2 * D:]

        def heads(t):
            return t.reshape(S, B, nhead, hd).transpose(1, 2, 0, 3)  # (B,H,S,hd)

        qh, kh, vh = heads(q) * scale, heads(k), heads(v)
        s = jnp.einsum('bhqd,bhkd->bhqk', qh, kh)
        if attn_bias is not None:
            s = s + attn_bias
        a = jax.nn.softmax(s, axis=-1)
        ctx = jnp.einsum('bhqk,bhkd->bhqd', a, vh)
        ctx = ctx.transpose(2, 0, 1, 3).reshape(S, B, D)
        attn = ctx @ prm["out_w"].T + prm["out_b"].reshape(-1)

        y = _layer_norm_ref(x + attn, prm["g1"], prm["be1"])
        h = jax.nn.relu(y @ prm["w1"].T + prm["b1"].reshape(-1))
        x = _layer_norm_ref(y + (h @ prm["w2"].T + prm["b2"].reshape(-1)),
                            prm["g2"], prm["be2"])
    if final_norm is not None:
        x = _layer_norm_ref(x, final_norm["gamma"], final_norm["beta"])
    return x


# ----------------------------------------------------------------------------
# Deterministic parameter init (shapes follow nn.TransformerEncoderLayer/DETR)
# ----------------------------------------------------------------------------
def init_layer_params(key, d_model, dff):
    ks = jax.random.split(key, 4)
    s = 0.02
    return dict(
        in_w=jax.random.normal(ks[0], (3 * d_model, d_model), jnp.float32) * s,
        in_b=jnp.zeros((1, 3 * d_model), jnp.float32),
        out_w=jax.random.normal(ks[1], (d_model, d_model), jnp.float32) * s,
        out_b=jnp.zeros((1, d_model), jnp.float32),
        w1=jax.random.normal(ks[2], (dff, d_model), jnp.float32) * s,
        b1=jnp.zeros((1, dff), jnp.float32),
        w2=jax.random.normal(ks[3], (d_model, dff), jnp.float32) * s,
        b2=jnp.zeros((1, d_model), jnp.float32),
        g1=jnp.ones((1, d_model), jnp.float32),
        be1=jnp.zeros((1, d_model), jnp.float32),
        g2=jnp.ones((1, d_model), jnp.float32),
        be2=jnp.zeros((1, d_model), jnp.float32),
    )


if __name__ == "__main__":
    # Small but lane-aligned shapes: D multiple of 128, S multiple of 8.
    S, B, D, NHEAD, DFF, NUM_LAYERS = 16, 2, 128, 4, 256, 2

    key = jax.random.PRNGKey(0)
    k_src, k_pos, k_par = jax.random.split(key, 3)
    src = jax.random.normal(k_src, (S, B, D), jnp.float32)
    pos = jax.random.normal(k_pos, (S, B, D), jnp.float32)
    layer_params = [init_layer_params(jax.random.fold_in(k_par, i), D, DFF)
                    for i in range(NUM_LAYERS)]

    # 1) DETR default: norm=None, masks None -> mask-free kernel variant.
    out = transformer_encoder(src, pos, layer_params, NHEAD,
                              mask=None, src_key_padding_mask=None,
                              final_norm=None)
    out = jax.block_until_ready(out)
    assert out.shape == (S, B, D) and out.dtype == jnp.float32
    assert bool(jnp.all(jnp.isfinite(out)))
    ref = transformer_encoder_ref(src, pos, layer_params, NHEAD)
    err = float(jnp.max(jnp.abs(out - ref)))
    assert err < 0.1, f"mask-free mismatch: max abs err = {err}"

    # 2) Key-padding-mask + final-norm variant exercises the combined-mask path.
    kpm = jnp.zeros((B, S), dtype=bool).at[1, S - 4:].set(True)
    final = {"gamma": jnp.ones((D,), jnp.float32),
             "beta": jnp.zeros((D,), jnp.float32)}
    out_m = jax.block_until_ready(
        transformer_encoder(src, pos, layer_params, NHEAD,
                            src_key_padding_mask=kpm, final_norm=final))
    bias = jnp.where(kpm, -1e9, 0.0)[:, None, None, :]
    ref_m = transformer_encoder_ref(src, pos, layer_params, NHEAD,
                                    attn_bias=bias, final_norm=final)
    assert bool(jnp.all(jnp.isfinite(out_m)))
    err_m = float(jnp.max(jnp.abs(out_m - ref_m)))
    assert err_m < 0.1, f"masked mismatch: max abs err = {err_m}"

    print("KERNEL_OK")
</pallas_src>

<mosaic_0001>
module attributes {stable_mosaic.version = 11 : i64} {
  func.func @encoder_stack_kernel(%arg0: i32, %arg1: i32, %arg2: memref<1x16x128xf32, #tpu.memory_space<vmem>>, %arg3: memref<1x16x128xf32, #tpu.memory_space<vmem>>, %arg4: memref<2x128x256xbf16, #tpu.memory_space<vmem>>, %arg5: memref<2x1x256xf32, #tpu.memory_space<vmem>>, %arg6: memref<2x128x128xbf16, #tpu.memory_space<vmem>>, %arg7: memref<2x1x128xf32, #tpu.memory_space<vmem>>, %arg8: memref<2x4x32x128xbf16, #tpu.memory_space<vmem>>, %arg9: memref<2x1x128xf32, #tpu.memory_space<vmem>>, %arg10: memref<2x128x256xbf16, #tpu.memory_space<vmem>>, %arg11: memref<2x1x256xf32, #tpu.memory_space<vmem>>, %arg12: memref<2x256x128xbf16, #tpu.memory_space<vmem>>, %arg13: memref<2x1x128xf32, #tpu.memory_space<vmem>>, %arg14: memref<2x1x128xf32, #tpu.memory_space<vmem>>, %arg15: memref<2x1x128xf32, #tpu.memory_space<vmem>>, %arg16: memref<2x1x128xf32, #tpu.memory_space<vmem>>, %arg17: memref<2x1x128xf32, #tpu.memory_space<vmem>>, %arg18: memref<1x16x128xf32, #tpu.memory_space<vmem>>, %arg19: memref<16x128xf32, #tpu.memory_space<vmem>>) attributes {dimension_semantics = [#tpu.dimension_semantics<parallel>, #tpu.dimension_semantics<arbitrary>], iteration_bounds = array<i64: 2, 2>, scalar_prefetch = 0 : i64, scratch_operands = 1 : i64, tpu.core_type = #tpu.core_type<tc>, window_params = [{transform_indices = @transform_0, window_bounds = array<i64: 1, 16, 128>}, {transform_indices = @transform_1, window_bounds = array<i64: 1, 16, 128>}, {pipeline_mode = #tpu.pipeline_mode<synchronous>, transform_indices = @transform_2, window_bounds = array<i64: 2, 128, 256>}, {pipeline_mode = #tpu.pipeline_mode<synchronous>, transform_indices = @transform_3, window_bounds = array<i64: 2, 1, 256>}, {pipeline_mode = #tpu.pipeline_mode<synchronous>, transform_indices = @transform_4, window_bounds = array<i64: 2, 128, 128>}, {pipeline_mode = #tpu.pipeline_mode<synchronous>, transform_indices = @transform_5, window_bounds = array<i64: 2, 1, 128>}, {pipeline_mode = #tpu.pipeline_mode<synchronous>, transform_indices = @transform_6, window_bounds = array<i64: 2, 4, 32, 128>}, {pipeline_mode = #tpu.pipeline_mode<synchronous>, transform_indices = @transform_7, window_bounds = array<i64: 2, 1, 128>}, {pipeline_mode = #tpu.pipeline_mode<synchronous>, transform_indices = @transform_8, window_bounds = array<i64: 2, 128, 256>}, {pipeline_mode = #tpu.pipeline_mode<synchronous>, transform_indices = @transform_9, window_bounds = array<i64: 2, 1, 256>}, {pipeline_mode = #tpu.pipeline_mode<synchronous>, transform_indices = @transform_10, window_bounds = array<i64: 2, 256, 128>}, {pipeline_mode = #tpu.pipeline_mode<synchronous>, transform_indices = @transform_11, window_bounds = array<i64: 2, 1, 128>}, {pipeline_mode = #tpu.pipeline_mode<synchronous>, transform_indices = @transform_12, window_bounds = array<i64: 2, 1, 128>}, {pipeline_mode = #tpu.pipeline_mode<synchronous>, transform_indices = @transform_13, window_bounds = array<i64: 2, 1, 128>}, {pipeline_mode = #tpu.pipeline_mode<synchronous>, transform_indices = @transform_14, window_bounds = array<i64: 2, 1, 128>}, {pipeline_mode = #tpu.pipeline_mode<synchronous>, transform_indices = @transform_15, window_bounds = array<i64: 2, 1, 128>}, {transform_indices = @transform_16, window_bounds = array<i64: 1, 16, 128>}]} {
    %c0_i32 = arith.constant 0 : i32
    %0 = arith.cmpi eq, %arg1, %c0_i32 : i32
    %1 = arith.extui %0 : i1 to i32
    %c0_i32_0 = arith.constant 0 : i32
    %2 = arith.cmpi ne, %1, %c0_i32_0 : i32
    scf.if %2 {
      %c0_78 = arith.constant 0 : index
      %c0_79 = arith.constant 0 : index
      %c0_80 = arith.constant 0 : index
      %209 = vector.load %arg2[%c0_78, %c0_79, %c0_80] : memref<1x16x128xf32, #tpu.memory_space<vmem>>, vector<1x16x128xf32>
      %210 = vector.shape_cast %209 : vector<1x16x128xf32> to vector<16x128xf32>
      %c0_81 = arith.constant 0 : index
      %c0_82 = arith.constant 0 : index
      %211 = vector.load %arg19[%c0_81, %c0_82] : memref<16x128xf32, #tpu.memory_space<vmem>>, vector<16x128xf32>
      tpu.vector_store %arg19[%c0_81, %c0_82], %210 {strides = array<i32>} : memref<16x128xf32, #tpu.memory_space<vmem>>, vector<16x128xf32>,
    } else {
    }
    %c0 = arith.constant 0 : index
    %c0_1 = arith.constant 0 : index
    %3 = vector.load %arg19[%c0, %c0_1] : memref<16x128xf32, #tpu.memory_space<vmem>>, vector<16x128xf32>
    %c0_2 = arith.constant 0 : index
    %c0_3 = arith.constant 0 : index
    %c0_4 = arith.constant 0 : index
    %4 = vector.load %arg3[%c0_2, %c0_3, %c0_4] : memref<1x16x128xf32, #tpu.memory_space<vmem>>, vector<1x16x128xf32>
    %5 = vector.shape_cast %4 : vector<1x16x128xf32> to vector<16x128xf32>
    %6 = arith.addf %3, %5 : vector<16x128xf32>
    %7 = arith.truncf %6 : vector<16x128xf32> to vector<16x128xbf16>
    %8 = arith.index_cast %arg1 : i32 to index
    %c0_5 = arith.constant 0 : index
    %c0_6 = arith.constant 0 : index
    %9 = vector.load %arg4[%8, %c0_5, %c0_6] : memref<2x128x256xbf16, #tpu.memory_space<vmem>>, vector<1x128x256xbf16>
    %10 = vector.shape_cast %9 : vector<1x128x256xbf16> to vector<128x256xbf16>
    %cst = arith.constant dense<0.000000e+00> : vector<16x256xf32>
    %11 = tpu.matmul %7, %10, %cst {dimension_numbers = #tpu.dot_dimension_numbers<[1], [0], [0], [1], [0, 0, 1, 1], [], []>} : vector<16x128xbf16>, vector<128x256xbf16>, vector<16x256xf32> -> vector<16x256xf32>
    %12 = arith.index_cast %arg1 : i32 to index
    %c0_7 = arith.constant 0 : index
    %c0_8 = arith.constant 0 : index
    %13 = vector.load %arg5[%12, %c0_7, %c0_8] : memref<2x1x256xf32, #tpu.memory_space<vmem>>, vector<1x1x256xf32>
    %14 = vector.shape_cast %13 : vector<1x1x256xf32> to vector<1x256xf32>
    %15 = vector.broadcast %14 : vector<1x256xf32> to vector<16x256xf32>
    %16 = arith.addf %11, %15 : vector<16x256xf32>
    %17 = arith.truncf %3 : vector<16x128xf32> to vector<16x128xbf16>
    %18 = arith.index_cast %arg1 : i32 to index
    %c0_9 = arith.constant 0 : index
    %c0_10 = arith.constant 0 : index
    %19 = vector.load %arg6[%18, %c0_9, %c0_10] : memref<2x128x128xbf16, #tpu.memory_space<vmem>>, vector<1x128x128xbf16>
    %20 = vector.shape_cast %19 : vector<1x128x128xbf16> to vector<128x128xbf16>
    %cst_11 = arith.constant dense<0.000000e+00> : vector<16x128xf32>
    %21 = tpu.matmul %17, %20, %cst_11 {dimension_numbers = #tpu.dot_dimension_numbers<[1], [0], [0], [1], [0, 0, 1, 1], [], []>} : vector<16x128xbf16>, vector<128x128xbf16>, vector<16x128xf32> -> vector<16x128xf32>
    %22 = arith.index_cast %arg1 : i32 to index
    %c0_12 = arith.constant 0 : index
    %c0_13 = arith.constant 0 : index
    %23 = vector.load %arg7[%22, %c0_12, %c0_13] : memref<2x1x128xf32, #tpu.memory_space<vmem>>, vector<1x1x128xf32>
    %24 = vector.shape_cast %23 : vector<1x1x128xf32> to vector<1x128xf32>
    %25 = vector.broadcast %24 : vector<1x128xf32> to vector<16x128xf32>
    %26 = arith.addf %21, %25 : vector<16x128xf32>
    %27 = arith.truncf %16 : vector<16x256xf32> to vector<16x256xbf16>
    %28 = arith.truncf %26 : vector<16x128xf32> to vector<16x128xbf16>
    %cst_14 = arith.constant 0.000000e+00 : f32
    %29 = vector.broadcast %cst_14 : f32 to vector<16x128xf32>
    %30 = vector.extract_strided_slice %27 {offsets = [0, 0], sizes = [16, 32], strides = [1, 1]} : vector<16x256xbf16> to vector<16x32xbf16>
    %31 = vector.extract_strided_slice %27 {offsets = [0, 128], sizes = [16, 32], strides = [1, 1]} : vector<16x256xbf16> to vector<16x32xbf16>
    %32 = vector.extract_strided_slice %28 {offsets = [0, 0], sizes = [16, 32], strides = [1, 1]} : vector<16x128xbf16> to vector<16x32xbf16>
    %cst_15 = arith.constant dense<0.000000e+00> : vector<16x16xf32>
    %33 = tpu.matmul %30, %31, %cst_15 {dimension_numbers = #tpu.dot_dimension_numbers<[1], [1], [0], [0], [0, 0, 1, 0], [], []>} : vector<16x32xbf16>, vector<16x32xbf16>, vector<16x16xf32> -> vector<16x16xf32>
    %cst_16 = arith.constant dense<0xFF800000> : vector<16xf32>
    %34 = vector.multi_reduction <maximumf>, %33, %cst_16 [1] : vector<16x16xf32> to vector<16xf32>
    %35 = vector.shape_cast %34 : vector<16xf32> to vector<16x1xf32>
    %36 = vector.broadcast %35 : vector<16x1xf32> to vector<16x16xf32>
    %37 = arith.subf %33, %36 : vector<16x16xf32>
    %38 = math.exp %37 : vector<16x16xf32>
    %cst_17 = arith.constant dense<0.000000e+00> : vector<16xf32>
    %39 = vector.multi_reduction <add>, %38, %cst_17 [1] : vector<16x16xf32> to vector<16xf32>
    %40 = vector.shape_cast %39 : vector<16xf32> to vector<16x1xf32>
    %41 = tpu.reciprocal %40 {approx = true} : vector<16x1xf32> -> vector<16x1xf32>
    %42 = vector.broadcast %41 : vector<16x1xf32> to vector<16x16xf32>
    %43 = arith.mulf %38, %42 : vector<16x16xf32>
    %44 = arith.truncf %43 : vector<16x16xf32> to vector<16x16xbf16>
    %cst_18 = arith.constant dense<0.000000e+00> : vector<16x32xf32>
    %45 = tpu.matmul %44, %32, %cst_18 {dimension_numbers = #tpu.dot_dimension_numbers<[1], [0], [0], [1], [0, 0, 1, 1], [], []>} : vector<16x16xbf16>, vector<16x32xbf16>, vector<16x32xf32> -> vector<16x32xf32>
    %46 = arith.truncf %45 : vector<16x32xf32> to vector<16x32xbf16>
    %47 = arith.index_cast %arg1 : i32 to index
    %c0_19 = arith.constant 0 : index
    %c0_20 = arith.constant 0 : index
    %c0_21 = arith.constant 0 : index
    %48 = vector.load %arg8[%47, %c0_19, %c0_20, %c0_21] : memref<2x4x32x128xbf16, #tpu.memory_space<vmem>>, vector<1x1x32x128xbf16>
    %49 = vector.shape_cast %48 : vector<1x1x32x128xbf16> to vector<32x128xbf16>
    %cst_22 = arith.constant dense<0.000000e+00> : vector<16x128xf32>
    %50 = tpu.matmul %46, %49, %cst_22 {dimension_numbers = #tpu.dot_dimension_numbers<[1], [0], [0], [1], [0, 0, 1, 1], [], []>} : vector<16x32xbf16>, vector<32x128xbf16>, vector<16x128xf32> -> vector<16x128xf32>
    %51 = arith.addf %29, %50 : vector<16x128xf32>
    %52 = vector.extract_strided_slice %27 {offsets = [0, 32], sizes = [16, 32], strides = [1, 1]} : vector<16x256xbf16> to vector<16x32xbf16>
    %53 = vector.extract_strided_slice %27 {offsets = [0, 160], sizes = [16, 32], strides = [1, 1]} : vector<16x256xbf16> to vector<16x32xbf16>
    %54 = vector.extract_strided_slice %28 {offsets = [0, 32], sizes = [16, 32], strides = [1, 1]} : vector<16x128xbf16> to vector<16x32xbf16>
    %cst_23 = arith.constant dense<0.000000e+00> : vector<16x16xf32>
    %55 = tpu.matmul %52, %53, %cst_23 {dimension_numbers = #tpu.dot_dimension_numbers<[1], [1], [0], [0], [0, 0, 1, 0], [], []>} : vector<16x32xbf16>, vector<16x32xbf16>, vector<16x16xf32> -> vector<16x16xf32>
    %cst_24 = arith.constant dense<0xFF800000> : vector<16xf32>
    %56 = vector.multi_reduction <maximumf>, %55, %cst_24 [1] : vector<16x16xf32> to vector<16xf32>
    %57 = vector.shape_cast %56 : vector<16xf32> to vector<16x1xf32>
    %58 = vector.broadcast %57 : vector<16x1xf32> to vector<16x16xf32>
    %59 = arith.subf %55, %58 : vector<16x16xf32>
    %60 = math.exp %59 : vector<16x16xf32>
    %cst_25 = arith.constant dense<0.000000e+00> : vector<16xf32>
    %61 = vector.multi_reduction <add>, %60, %cst_25 [1] : vector<16x16xf32> to vector<16xf32>
    %62 = vector.shape_cast %61 : vector<16xf32> to vector<16x1xf32>
    %63 = tpu.reciprocal %62 {approx = true} : vector<16x1xf32> -> vector<16x1xf32>
    %64 = vector.broadcast %63 : vector<16x1xf32> to vector<16x16xf32>
    %65 = arith.mulf %60, %64 : vector<16x16xf32>
    %66 = arith.truncf %65 : vector<16x16xf32> to vector<16x16xbf16>
    %cst_26 = arith.constant dense<0.000000e+00> : vector<16x32xf32>
    %67 = tpu.matmul %66, %54, %cst_26 {dimension_numbers = #tpu.dot_dimension_numbers<[1], [0], [0], [1], [0, 0, 1, 1], [], []>} : vector<16x16xbf16>, vector<16x32xbf16>, vector<16x32xf32> -> vector<16x32xf32>
    %68 = arith.truncf %67 : vector<16x32xf32> to vector<16x32xbf16>
    %69 = arith.index_cast %arg1 : i32 to index
    %c1 = arith.constant 1 : index
    %c0_27 = arith.constant 0 : index
    %c0_28 = arith.constant 0 : index
    %70 = vector.load %arg8[%69, %c1, %c0_27, %c0_28] : memref<2x4x32x128xbf16, #tpu.memory_space<vmem>>, vector<1x1x32x128xbf16>
    %71 = vector.shape_cast %70 : vector<1x1x32x128xbf16> to vector<32x128xbf16>
    %cst_29 = arith.constant dense<0.000000e+00> : vector<16x128xf32>
    %72 = tpu.matmul %68, %71, %cst_29 {dimension_numbers = #tpu.dot_dimension_numbers<[1], [0], [0], [1], [0, 0, 1, 1], [], []>} : vector<16x32xbf16>, vector<32x128xbf16>, vector<16x128xf32> -> vector<16x128xf32>
    %73 = arith.addf %51, %72 : vector<16x128xf32>
    %74 = vector.extract_strided_slice %27 {offsets = [0, 64], sizes = [16, 32], strides = [1, 1]} : vector<16x256xbf16> to vector<16x32xbf16>
    %75 = vector.extract_strided_slice %27 {offsets = [0, 192], sizes = [16, 32], strides = [1, 1]} : vector<16x256xbf16> to vector<16x32xbf16>
    %76 = vector.extract_strided_slice %28 {offsets = [0, 64], sizes = [16, 32], strides = [1, 1]} : vector<16x128xbf16> to vector<16x32xbf16>
    %cst_30 = arith.constant dense<0.000000e+00> : vector<16x16xf32>
    %77 = tpu.matmul %74, %75, %cst_30 {dimension_numbers = #tpu.dot_dimension_numbers<[1], [1], [0], [0], [0, 0, 1, 0], [], []>} : vector<16x32xbf16>, vector<16x32xbf16>, vector<16x16xf32> -> vector<16x16xf32>
    %cst_31 = arith.constant dense<0xFF800000> : vector<16xf32>
    %78 = vector.multi_reduction <maximumf>, %77, %cst_31 [1] : vector<16x16xf32> to vector<16xf32>
    %79 = vector.shape_cast %78 : vector<16xf32> to vector<16x1xf32>
    %80 = vector.broadcast %79 : vector<16x1xf32> to vector<16x16xf32>
    %81 = arith.subf %77, %80 : vector<16x16xf32>
    %82 = math.exp %81 : vector<16x16xf32>
    %cst_32 = arith.constant dense<0.000000e+00> : vector<16xf32>
    %83 = vector.multi_reduction <add>, %82, %cst_32 [1] : vector<16x16xf32> to vector<16xf32>
    %84 = vector.shape_cast %83 : vector<16xf32> to vector<16x1xf32>
    %85 = tpu.reciprocal %84 {approx = true} : vector<16x1xf32> -> vector<16x1xf32>
    %86 = vector.broadcast %85 : vector<16x1xf32> to vector<16x16xf32>
    %87 = arith.mulf %82, %86 : vector<16x16xf32>
    %88 = arith.truncf %87 : vector<16x16xf32> to vector<16x16xbf16>
    %cst_33 = arith.constant dense<0.000000e+00> : vector<16x32xf32>
    %89 = tpu.matmul %88, %76, %cst_33 {dimension_numbers = #tpu.dot_dimension_numbers<[1], [0], [0], [1], [0, 0, 1, 1], [], []>} : vector<16x16xbf16>, vector<16x32xbf16>, vector<16x32xf32> -> vector<16x32xf32>
    %90 = arith.truncf %89 : vector<16x32xf32> to vector<16x32xbf16>
    %91 = arith.index_cast %arg1 : i32 to index
    %c2 = arith.constant 2 : index
    %c0_34 = arith.constant 0 : index
    %c0_35 = arith.constant 0 : index
    %92 = vector.load %arg8[%91, %c2, %c0_34, %c0_35] : memref<2x4x32x128xbf16, #tpu.memory_space<vmem>>, vector<1x1x32x128xbf16>
    %93 = vector.shape_cast %92 : vector<1x1x32x128xbf16> to vector<32x128xbf16>
    %cst_36 = arith.constant dense<0.000000e+00> : vector<16x128xf32>
    %94 = tpu.matmul %90, %93, %cst_36 {dimension_numbers = #tpu.dot_dimension_numbers<[1], [0], [0], [1], [0, 0, 1, 1], [], []>} : vector<16x32xbf16>, vector<32x128xbf16>, vector<16x128xf32> -> vector<16x128xf32>
    %95 = arith.addf %73, %94 : vector<16x128xf32>
    %96 = vector.extract_strided_slice %27 {offsets = [0, 96], sizes = [16, 32], strides = [1, 1]} : vector<16x256xbf16> to vector<16x32xbf16>
    %97 = vector.extract_strided_slice %27 {offsets = [0, 224], sizes = [16, 32], strides = [1, 1]} : vector<16x256xbf16> to vector<16x32xbf16>
    %98 = vector.extract_strided_slice %28 {offsets = [0, 96], sizes = [16, 32], strides = [1, 1]} : vector<16x128xbf16> to vector<16x32xbf16>
    %cst_37 = arith.constant dense<0.000000e+00> : vector<16x16xf32>
    %99 = tpu.matmul %96, %97, %cst_37 {dimension_numbers = #tpu.dot_dimension_numbers<[1], [1], [0], [0], [0, 0, 1, 0], [], []>} : vector<16x32xbf16>, vector<16x32xbf16>, vector<16x16xf32> -> vector<16x16xf32>
    %cst_38 = arith.constant dense<0xFF800000> : vector<16xf32>
    %100 = vector.multi_reduction <maximumf>, %99, %cst_38 [1] : vector<16x16xf32> to vector<16xf32>
    %101 = vector.shape_cast %100 : vector<16xf32> to vector<16x1xf32>
    %102 = vector.broadcast %101 : vector<16x1xf32> to vector<16x16xf32>
    %103 = arith.subf %99, %102 : vector<16x16xf32>
    %104 = math.exp %103 : vector<16x16xf32>
    %cst_39 = arith.constant dense<0.000000e+00> : vector<16xf32>
    %105 = vector.multi_reduction <add>, %104, %cst_39 [1] : vector<16x16xf32> to vector<16xf32>
    %106 = vector.shape_cast %105 : vector<16xf32> to vector<16x1xf32>
    %107 = tpu.reciprocal %106 {approx = true} : vector<16x1xf32> -> vector<16x1xf32>
    %108 = vector.broadcast %107 : vector<16x1xf32> to vector<16x16xf32>
    %109 = arith.mulf %104, %108 : vector<16x16xf32>
    %110 = arith.truncf %109 : vector<16x16xf32> to vector<16x16xbf16>
    %cst_40 = arith.constant dense<0.000000e+00> : vector<16x32xf32>
    %111 = tpu.matmul %110, %98, %cst_40 {dimension_numbers = #tpu.dot_dimension_numbers<[1], [0], [0], [1], [0, 0, 1, 1], [], []>} : vector<16x16xbf16>, vector<16x32xbf16>, vector<16x32xf32> -> vector<16x32xf32>
    %112 = arith.truncf %111 : vector<16x32xf32> to vector<16x32xbf16>
    %113 = arith.index_cast %arg1 : i32 to index
    %c3 = arith.constant 3 : index
    %c0_41 = arith.constant 0 : index
    %c0_42 = arith.constant 0 : index
    %114 = vector.load %arg8[%113, %c3, %c0_41, %c0_42] : memref<2x4x32x128xbf16, #tpu.memory_space<vmem>>, vector<1x1x32x128xbf16>
    %115 = vector.shape_cast %114 : vector<1x1x32x128xbf16> to vector<32x128xbf16>
    %cst_43 = arith.constant dense<0.000000e+00> : vector<16x128xf32>
    %116 = tpu.matmul %112, %115, %cst_43 {dimension_numbers = #tpu.dot_dimension_numbers<[1], [0], [0], [1], [0, 0, 1, 1], [], []>} : vector<16x32xbf16>, vector<32x128xbf16>, vector<16x128xf32> -> vector<16x128xf32>
    %117 = arith.addf %95, %116 : vector<16x128xf32>
    %118 = arith.index_cast %arg1 : i32 to index
    %c0_44 = arith.constant 0 : index
    %c0_45 = arith.constant 0 : index
    %119 = vector.load %arg9[%118, %c0_44, %c0_45] : memref<2x1x128xf32, #tpu.memory_space<vmem>>, vector<1x1x128xf32>
    %120 = vector.shape_cast %119 : vector<1x1x128xf32> to vector<1x128xf32>
    %121 = vector.broadcast %120 : vector<1x128xf32> to vector<16x128xf32>
    %122 = arith.addf %117, %121 : vector<16x128xf32>
    %123 = arith.addf %3, %122 : vector<16x128xf32>
    %cst_46 = arith.constant dense<0.000000e+00> : vector<16xf32>
    %124 = vector.multi_reduction <add>, %123, %cst_46 [1] : vector<16x128xf32> to vector<16xf32>
    %125 = vector.shape_cast %124 : vector<16xf32> to vector<16x1xf32>
    %cst_47 = arith.constant 1.280000e+02 : f32
    %126 = vector.broadcast %cst_47 : f32 to vector<16x1xf32>
    %127 = arith.divf %125, %126 : vector<16x1xf32>
    %128 = vector.broadcast %127 : vector<16x1xf32> to vector<16x128xf32>
    %129 = arith.subf %123, %128 : vector<16x128xf32>
    %130 = arith.mulf %129, %129 : vector<16x128xf32>
    %cst_48 = arith.constant dense<0.000000e+00> : vector<16xf32>
    %131 = vector.multi_reduction <add>, %130, %cst_48 [1] : vector<16x128xf32> to vector<16xf32>
    %132 = vector.shape_cast %131 : vector<16xf32> to vector<16x1xf32>
    %cst_49 = arith.constant 1.280000e+02 : f32
    %133 = vector.broadcast %cst_49 : f32 to vector<16x1xf32>
    %134 = arith.divf %132, %133 : vector<16x1xf32>
    %135 = vector.broadcast %127 : vector<16x1xf32> to vector<16x128xf32>
    %136 = arith.subf %123, %135 : vector<16x128xf32>
    %cst_50 = arith.constant 9.99999974E-6 : f32
    %137 = vector.broadcast %cst_50 : f32 to vector<16x1xf32>
    %138 = arith.addf %134, %137 : vector<16x1xf32>
    %139 = math.rsqrt %138 : vector<16x1xf32>
    %140 = vector.broadcast %139 : vector<16x1xf32> to vector<16x128xf32>
    %141 = arith.mulf %136, %140 : vector<16x128xf32>
    %142 = arith.index_cast %arg1 : i32 to index
    %c0_51 = arith.constant 0 : index
    %c0_52 = arith.constant 0 : index
    %143 = vector.load %arg14[%142, %c0_51, %c0_52] : memref<2x1x128xf32, #tpu.memory_space<vmem>>, vector<1x1x128xf32>
    %144 = vector.shape_cast %143 : vector<1x1x128xf32> to vector<1x128xf32>
    %145 = vector.broadcast %144 : vector<1x128xf32> to vector<16x128xf32>
    %146 = arith.mulf %141, %145 : vector<16x128xf32>
    %147 = arith.index_cast %arg1 : i32 to index
    %c0_53 = arith.constant 0 : index
    %c0_54 = arith.constant 0 : index
    %148 = vector.load %arg15[%147, %c0_53, %c0_54] : memref<2x1x128xf32, #tpu.memory_space<vmem>>, vector<1x1x128xf32>
    %149 = vector.shape_cast %148 : vector<1x1x128xf32> to vector<1x128xf32>
    %150 = vector.broadcast %149 : vector<1x128xf32> to vector<16x128xf32>
    %151 = arith.addf %146, %150 : vector<16x128xf32>
    %152 = arith.truncf %151 : vector<16x128xf32> to vector<16x128xbf16>
    %153 = arith.index_cast %arg1 : i32 to index
    %c0_55 = arith.constant 0 : index
    %c0_56 = arith.constant 0 : index
    %154 = vector.load %arg10[%153, %c0_55, %c0_56] : memref<2x128x256xbf16, #tpu.memory_space<vmem>>, vector<1x128x256xbf16>
    %155 = vector.shape_cast %154 : vector<1x128x256xbf16> to vector<128x256xbf16>
    %cst_57 = arith.constant dense<0.000000e+00> : vector<16x256xf32>
    %156 = tpu.matmul %152, %155, %cst_57 {dimension_numbers = #tpu.dot_dimension_numbers<[1], [0], [0], [1], [0, 0, 1, 1], [], []>} : vector<16x128xbf16>, vector<128x256xbf16>, vector<16x256xf32> -> vector<16x256xf32>
    %157 = arith.index_cast %arg1 : i32 to index
    %c0_58 = arith.constant 0 : index
    %c0_59 = arith.constant 0 : index
    %158 = vector.load %arg11[%157, %c0_58, %c0_59] : memref<2x1x256xf32, #tpu.memory_space<vmem>>, vector<1x1x256xf32>
    %159 = vector.shape_cast %158 : vector<1x1x256xf32> to vector<1x256xf32>
    %160 = vector.broadcast %159 : vector<1x256xf32> to vector<16x256xf32>
    %161 = arith.addf %156, %160 : vector<16x256xf32>
    %cst_60 = arith.constant 0.000000e+00 : f32
    %162 = vector.broadcast %cst_60 : f32 to vector<16x256xf32>
    %163 = arith.maximumf %161, %162 : vector<16x256xf32>
    %164 = arith.truncf %163 : vector<16x256xf32> to vector<16x256xbf16>
    %165 = arith.index_cast %arg1 : i32 to index
    %c0_61 = arith.constant 0 : index
    %c0_62 = arith.constant 0 : index
    %166 = vector.load %arg12[%165, %c0_61, %c0_62] : memref<2x256x128xbf16, #tpu.memory_space<vmem>>, vector<1x256x128xbf16>
    %167 = vector.shape_cast %166 : vector<1x256x128xbf16> to vector<256x128xbf16>
    %cst_63 = arith.constant dense<0.000000e+00> : vector<16x128xf32>
    %168 = tpu.matmul %164, %167, %cst_63 {dimension_numbers = #tpu.dot_dimension_numbers<[1], [0], [0], [1], [0, 0, 1, 1], [], []>} : vector<16x256xbf16>, vector<256x128xbf16>, vector<16x128xf32> -> vector<16x128xf32>
    %169 = arith.index_cast %arg1 : i32 to index
    %c0_64 = arith.constant 0 : index
    %c0_65 = arith.constant 0 : index
    %170 = vector.load %arg13[%169, %c0_64, %c0_65] : memref<2x1x128xf32, #tpu.memory_space<vmem>>, vector<1x1x128xf32>
    %171 = vector.shape_cast %170 : vector<1x1x128xf32> to vector<1x128xf32>
    %172 = vector.broadcast %171 : vector<1x128xf32> to vector<16x128xf32>
    %173 = arith.addf %168, %172 : vector<16x128xf32>
    %174 = arith.addf %151, %173 : vector<16x128xf32>
    %cst_66 = arith.constant dense<0.000000e+00> : vector<16xf32>
    %175 = vector.multi_reduction <add>, %174, %cst_66 [1] : vector<16x128xf32> to vector<16xf32>
    %176 = vector.shape_cast %175 : vector<16xf32> to vector<16x1xf32>
    %cst_67 = arith.constant 1.280000e+02 : f32
    %177 = vector.broadcast %cst_67 : f32 to vector<16x1xf32>
    %178 = arith.divf %176, %177 : vector<16x1xf32>
    %179 = vector.broadcast %178 : vector<16x1xf32> to vector<16x128xf32>
    %180 = arith.subf %174, %179 : vector<16x128xf32>
    %181 = arith.mulf %180, %180 : vector<16x128xf32>
    %cst_68 = arith.constant dense<0.000000e+00> : vector<16xf32>
    %182 = vector.multi_reduction <add>, %181, %cst_68 [1] : vector<16x128xf32> to vector<16xf32>
    %183 = vector.shape_cast %182 : vector<16xf32> to vector<16x1xf32>
    %cst_69 = arith.constant 1.280000e+02 : f32
    %184 = vector.broadcast %cst_69 : f32 to vector<16x1xf32>
    %185 = arith.divf %183, %184 : vector<16x1xf32>
    %186 = vector.broadcast %178 : vector<16x1xf32> to vector<16x128xf32>
    %187 = arith.subf %174, %186 : vector<16x128xf32>
    %cst_70 = arith.constant 9.99999974E-6 : f32
    %188 = vector.broadcast %cst_70 : f32 to vector<16x1xf32>
    %189 = arith.addf %185, %188 : vector<16x1xf32>
    %190 = math.rsqrt %189 : vector<16x1xf32>
    %191 = vector.broadcast %190 : vector<16x1xf32> to vector<16x128xf32>
    %192 = arith.mulf %187, %191 : vector<16x128xf32>
    %193 = arith.index_cast %arg1 : i32 to index
    %c0_71 = arith.constant 0 : index
    %c0_72 = arith.constant 0 : index
    %194 = vector.load %arg16[%193, %c0_71, %c0_72] : memref<2x1x128xf32, #tpu.memory_space<vmem>>, vector<1x1x128xf32>
    %195 = vector.shape_cast %194 : vector<1x1x128xf32> to vector<1x128xf32>
    %196 = vector.broadcast %195 : vector<1x128xf32> to vector<16x128xf32>
    %197 = arith.mulf %192, %196 : vector<16x128xf32>
    %198 = arith.index_cast %arg1 : i32 to index
    %c0_73 = arith.constant 0 : index
    %c0_74 = arith.constant 0 : index
    %199 = vector.load %arg17[%198, %c0_73, %c0_74] : memref<2x1x128xf32, #tpu.memory_space<vmem>>, vector<1x1x128xf32>
    %200 = vector.shape_cast %199 : vector<1x1x128xf32> to vector<1x128xf32>
    %201 = vector.broadcast %200 : vector<1x128xf32> to vector<16x128xf32>
    %202 = arith.addf %197, %201 : vector<16x128xf32>
    %c1_i32 = arith.constant 1 : i32
    %203 = arith.cmpi slt, %arg1, %c1_i32 : i32
    %204 = arith.extui %203 : i1 to i32
    %c0_i32_75 = arith.constant 0 : i32
    %205 = arith.cmpi ne, %204, %c0_i32_75 : i32
    scf.if %205 {
      %c0_78 = arith.constant 0 : index
      %c0_79 = arith.constant 0 : index
      %209 = vector.load %arg19[%c0_78, %c0_79] : memref<16x128xf32, #tpu.memory_space<vmem>>, vector<16x128xf32>
      tpu.vector_store %arg19[%c0_78, %c0_79], %202 {strides = array<i32>} : memref<16x128xf32, #tpu.memory_space<vmem>>, vector<16x128xf32>,
    } else {
    }
    %c1_i32_76 = arith.constant 1 : i32
    %206 = arith.cmpi eq, %arg1, %c1_i32_76 : i32
    %207 = arith.extui %206 : i1 to i32
    %c0_i32_77 = arith.constant 0 : i32
    %208 = arith.cmpi ne, %207, %c0_i32_77 : i32
    scf.if %208 {
      %c0_78 = arith.constant 0 : index
      %c0_79 = arith.constant 0 : index
      %c0_80 = arith.constant 0 : index
      %209 = vector.load %arg18[%c0_78, %c0_79, %c0_80] : memref<1x16x128xf32, #tpu.memory_space<vmem>>, vector<1x16x128xf32>
      %210 = vector.shape_cast %209 : vector<1x16x128xf32> to vector<16x128xf32>
      %211 = vector.shape_cast %202 : vector<16x128xf32> to vector<1x16x128xf32>
      tpu.vector_store %arg18[%c0_78, %c0_79, %c0_80], %211 {strides = array<i32>} : memref<1x16x128xf32, #tpu.memory_space<vmem>>, vector<1x16x128xf32>,
    } else {
    }
    return
  }
  func.func @transform_0(%arg0: i32, %arg1: i32) -> (i32, i32, i32) {
    %c0_i32 = arith.constant 0 : i32
    %c0_i32_0 = arith.constant 0 : i32
    %c0_i32_1 = arith.constant 0 : i32
    return %arg0, %c0_i32, %c0_i32_0 : i32, i32, i32
  }
  func.func @transform_1(%arg0: i32, %arg1: i32) -> (i32, i32, i32) {
    %c0_i32 = arith.constant 0 : i32
    %c0_i32_0 = arith.constant 0 : i32
    %c0_i32_1 = arith.constant 0 : i32
    return %arg0, %c0_i32, %c0_i32_0 : i32, i32, i32
  }
  func.func @transform_2(%arg0: i32, %arg1: i32) -> (i32, i32, i32) {
    %c0_i32 = arith.constant 0 : i32
    %c0_i32_0 = arith.constant 0 : i32
    %c0_i32_1 = arith.constant 0 : i32
    %c0_i32_2 = arith.constant 0 : i32
    return %c0_i32, %c0_i32_0, %c0_i32_1 : i32, i32, i32
  }
  func.func @transform_3(%arg0: i32, %arg1: i32) -> (i32, i32, i32) {
    %c0_i32 = arith.constant 0 : i32
    %c0_i32_0 = arith.constant 0 : i32
    %c0_i32_1 = arith.constant 0 : i32
    %c0_i32_2 = arith.constant 0 : i32
    return %c0_i32, %c0_i32_0, %c0_i32_1 : i32, i32, i32
  }
  func.func @transform_4(%arg0: i32, %arg1: i32) -> (i32, i32, i32) {
    %c0_i32 = arith.constant 0 : i32
    %c0_i32_0 = arith.constant 0 : i32
    %c0_i32_1 = arith.constant 0 : i32
    %c0_i32_2 = arith.constant 0 : i32
    return %c0_i32, %c0_i32_0, %c0_i32_1 : i32, i32, i32
  }
  func.func @transform_5(%arg0: i32, %arg1: i32) -> (i32, i32, i32) {
    %c0_i32 = arith.constant 0 : i32
    %c0_i32_0 = arith.constant 0 : i32
    %c0_i32_1 = arith.constant 0 : i32
    %c0_i32_2 = arith.constant 0 : i32
    return %c0_i32, %c0_i32_0, %c0_i32_1 : i32, i32, i32
  }
  func.func @transform_6(%arg0: i32, %arg1: i32) -> (i32, i32, i32, i32) {
    %c0_i32 = arith.constant 0 : i32
    %c0_i32_0 = arith.constant 0 : i32
    %c0_i32_1 = arith.constant 0 : i32
    %c0_i32_2 = arith.constant 0 : i32
    %c0_i32_3 = arith.constant 0 : i32
    return %c0_i32, %c0_i32_0, %c0_i32_1, %c0_i32_2 : i32, i32, i32, i32
  }
  func.func @transform_7(%arg0: i32, %arg1: i32) -> (i32, i32, i32) {
    %c0_i32 = arith.constant 0 : i32
    %c0_i32_0 = arith.constant 0 : i32
    %c0_i32_1 = arith.constant 0 : i32
    %c0_i32_2 = arith.constant 0 : i32
    return %c0_i32, %c0_i32_0, %c0_i32_1 : i32, i32, i32
  }
  func.func @transform_8(%arg0: i32, %arg1: i32) -> (i32, i32, i32) {
    %c0_i32 = arith.constant 0 : i32
    %c0_i32_0 = arith.constant 0 : i32
    %c0_i32_1 = arith.constant 0 : i32
    %c0_i32_2 = arith.constant 0 : i32
    return %c0_i32, %c0_i32_0, %c0_i32_1 : i32, i32, i32
  }
  func.func @transform_9(%arg0: i32, %arg1: i32) -> (i32, i32, i32) {
    %c0_i32 = arith.constant 0 : i32
    %c0_i32_0 = arith.constant 0 : i32
    %c0_i32_1 = arith.constant 0 : i32
    %c0_i32_2 = arith.constant 0 : i32
    return %c0_i32, %c0_i32_0, %c0_i32_1 : i32, i32, i32
  }
  func.func @transform_10(%arg0: i32, %arg1: i32) -> (i32, i32, i32) {
    %c0_i32 = arith.constant 0 : i32
    %c0_i32_0 = arith.constant 0 : i32
    %c0_i32_1 = arith.constant 0 : i32
    %c0_i32_2 = arith.constant 0 : i32
    return %c0_i32, %c0_i32_0, %c0_i32_1 : i32, i32, i32
  }
  func.func @transform_11(%arg0: i32, %arg1: i32) -> (i32, i32, i32) {
    %c0_i32 = arith.constant 0 : i32
    %c0_i32_0 = arith.constant 0 : i32
    %c0_i32_1 = arith.constant 0 : i32
    %c0_i32_2 = arith.constant 0 : i32
    return %c0_i32, %c0_i32_0, %c0_i32_1 : i32, i32, i32
  }
  func.func @transform_12(%arg0: i32, %arg1: i32) -> (i32, i32, i32) {
    %c0_i32 = arith.constant 0 : i32
    %c0_i32_0 = arith.constant 0 : i32
    %c0_i32_1 = arith.constant 0 : i32
    %c0_i32_2 = arith.constant 0 : i32
    return %c0_i32, %c0_i32_0, %c0_i32_1 : i32, i32, i32
  }
  func.func @transform_13(%arg0: i32, %arg1: i32) -> (i32, i32, i32) {
    %c0_i32 = arith.constant 0 : i32
    %c0_i32_0 = arith.constant 0 : i32
    %c0_i32_1 = arith.constant 0 : i32
    %c0_i32_2 = arith.constant 0 : i32
    return %c0_i32, %c0_i32_0, %c0_i32_1 : i32, i32, i32
  }
  func.func @transform_14(%arg0: i32, %arg1: i32) -> (i32, i32, i32) {
    %c0_i32 = arith.constant 0 : i32
    %c0_i32_0 = arith.constant 0 : i32
    %c0_i32_1 = arith.constant 0 : i32
    %c0_i32_2 = arith.constant 0 : i32
    return %c0_i32, %c0_i32_0, %c0_i32_1 : i32, i32, i32
  }
  func.func @transform_15(%arg0: i32, %arg1: i32) -> (i32, i32, i32) {
    %c0_i32 = arith.constant 0 : i32
    %c0_i32_0 = arith.constant 0 : i32
    %c0_i32_1 = arith.constant 0 : i32
    %c0_i32_2 = arith.constant 0 : i32
    return %c0_i32, %c0_i32_0, %c0_i32_1 : i32, i32, i32
  }
  func.func @transform_16(%arg0: i32, %arg1: i32) -> (i32, i32, i32) {
    %c0_i32 = arith.constant 0 : i32
    %c0_i32_0 = arith.constant 0 : i32
    %c0_i32_1 = arith.constant 0 : i32
    return %arg0, %c0_i32, %c0_i32_0 : i32, i32, i32
  }
}

</mosaic_0001>

<llo_original>
// kernel: tpu_custom_call.1
$region0: #{tpu_custom_call.1}
  #allocation0 [shape = 'u32[]', space=smem, size = 0x4, offset = 0x4, fixed_abs, tag = 'smem constant byte address 0x4 - core index']
  #allocation1 [shape = 'u32[144,128]{1,0:T(1,128)}', space=vmem, size = 0x12000, scoped, tag = 'internal scratch']
  #allocation2 [shape = 'f32[16,128]{1,0:T(8,128)}', space=vmem, size = 0x2000, scoped, tag = 'scratch operand']
  %s0 = inlined_call_operand.hbm [shape: f32[2,16,128], index: 0, kind: input, shape index: {}]
  %s1 = inlined_call_operand.hbm [shape: f32[2,16,128], index: 1, kind: input, shape index: {}]
  %s2 = inlined_call_operand.hbm [shape: bf16[2,128,256], index: 2, kind: input, shape index: {}]
  %s3 = inlined_call_operand.vmem [shape: f32[2,1,256], index: 3, kind: input, shape index: {}]
  %s4 = inlined_call_operand.hbm [shape: bf16[2,128,128], index: 4, kind: input, shape index: {}]
  %s5 = inlined_call_operand.vmem [shape: f32[2,1,128], index: 5, kind: input, shape index: {}]
  %s6 = inlined_call_operand.hbm [shape: bf16[2,4,32,128], index: 6, kind: input, shape index: {}]
  %s7 = inlined_call_operand.vmem [shape: f32[2,1,128], index: 7, kind: input, shape index: {}]
  %s8 = inlined_call_operand.hbm [shape: bf16[2,128,256], index: 8, kind: input, shape index: {}]
  %s9 = inlined_call_operand.vmem [shape: f32[2,1,256], index: 9, kind: input, shape index: {}]
  %s10 = inlined_call_operand.hbm [shape: bf16[2,256,128], index: 10, kind: input, shape index: {}]
  %s11 = inlined_call_operand.vmem [shape: f32[2,1,128], index: 11, kind: input, shape index: {}]
  %s12 = inlined_call_operand.vmem [shape: f32[2,1,128], index: 12, kind: input, shape index: {}]
  %s13 = inlined_call_operand.vmem [shape: f32[2,1,128], index: 13, kind: input, shape index: {}]
  %s14 = inlined_call_operand.vmem [shape: f32[2,1,128], index: 14, kind: input, shape index: {}]
  %s15 = inlined_call_operand.vmem [shape: f32[2,1,128], index: 15, kind: input, shape index: {}]
  %s16 = inlined_call_operand.hbm [shape: f32[2,16,128], index: 16, kind: output, shape index: {}]
  %s17 = sld [smem:[#allocation0]]
  $region137: #{tpu_custom_call.1} parent=0
    _
  %s19 = ssub.s32 1, %s17
  %s20 = scalar_select 0, %s19, %s17
  $region1: #{tpu_custom_call.1} parent=0
    #allocation3 [shape = 'u8[16384]{0}', space=vmem, size = 0x4000, scoped, tag = 'input window, operand 0']
    #allocation4 [shape = 's32[2]{0}', space=sflag, size = 0x8, scoped, tag = 'scoped memory for tpu_custom_call.1']
    #allocation5 [shape = 's32[2]{0}', space=sflag, size = 0x8, scoped, tag = 'scoped memory for tpu_custom_call.1']
    #allocation6 [shape = 'u8[16384]{0}', space=vmem, size = 0x4000, scoped, tag = 'input window, operand 1']
    #allocation7 [shape = 's32[2]{0}', space=sflag, size = 0x8, scoped, tag = 'scoped memory for tpu_custom_call.1']
    #allocation8 [shape = 'u8[131072]{0}', space=vmem, size = 0x20000, scoped, tag = 'input window, operand 2, single buffered']
    #allocation9 [shape = 'u8[65536]{0}', space=vmem, size = 0x10000, scoped, tag = 'input window, operand 4, single buffered']
    #allocation10 [shape = 's32[1]{0}', space=sflag, size = 0x4, scoped, tag = 'scoped memory for tpu_custom_call.1']
    #allocation11 [shape = 'u8[65536]{0}', space=vmem, size = 0x10000, scoped, tag = 'input window, operand 6, single buffered']
    #allocation12 [shape = 'u8[131072]{0}', space=vmem, size = 0x20000, scoped, tag = 'input window, operand 8, single buffered']
    #allocation13 [shape = 's32[1]{0}', space=sflag, size = 0x4, scoped, tag = 'scoped memory for tpu_custom_call.1']
    #allocation14 [shape = 'u8[131072]{0}', space=vmem, size = 0x20000, scoped, tag = 'input window, operand 10, single buffered']
    #allocation15 [shape = 'u8[16384]{0}', space=vmem, size = 0x4000, scoped, tag = 'output window, operand 0']
    %21 = vsyncpa [#allocation4], 0
    %s22 = scalar_lea.sflag [#allocation4], 1
    %23 = vsyncpa %s22, 0
    %24 = vsyncpa [#allocation7], 0
    %s25 = scalar_lea.sflag [#allocation7], 1
    %26 = vsyncpa %s25, 0
    %27 = vsyncpa [#allocation10], 0
    %28 = vsyncpa [#allocation13], 0
    %29 = vsyncpa [#allocation5], 0
    %s30 = scalar_lea.sflag [#allocation5], 1
    %31 = vsyncpa %s30, 0
    loop: start=0, step=1, limit=6
    $region2: #{tpu_custom_call.1} parent=1 // loop_pre_header
      _
    $region3: #{tpu_custom_call.1} parent=1 // loop_header
      %s33 = sphi 0, %s37
      %p34 = scmp.ge.s32.totalorder %s33, 6
      %s40 = sphi 0, %s52
      %s41 = sphi 0, %s48
      %s42 = sphi 0, %s40
      %s43 = sphi 0, %s41
      %s44 = sphi 0, %s42
      %s45 = sphi 0, %s43
      %s55 = sphi 0, %s57
      %s58 = sphi 0, %s55
      %s59 = sphi 0, %s58
      %s75 = sphi 0, %s59
      %s81 = sphi 0, %s83
      %s84 = sphi 0, %s81
      %s85 = sphi 0, %s84
      %s101 = sphi 0, %s85
      %s105 = sphi 0, %s105
      %s107 = sphi 0, %s105
      %s108 = sphi 0, %s107
      %s122 = sphi 0, %s108
      %s126 = sphi 0, %s126
      %s128 = sphi 0, %s126
      %s129 = sphi 0, %s128
      %s143 = sphi 0, %s129
      %s147 = sphi 0, %s147
      %s149 = sphi 0, %s147
      %s150 = sphi 0, %s149
      %s164 = sphi 0, %s150
      %s168 = sphi 0, %s168
      %s170 = sphi 0, %s168
      %s171 = sphi 0, %s170
      %s185 = sphi 0, %s171
      %s189 = sphi 0, %s189
      %s191 = sphi 0, %s189
      %s192 = sphi 0, %s191
      %s206 = sphi 0, %s192
      %s210 = sphi 0, %s210
      %s212 = sphi 0, %s210
      %s213 = sphi 0, %s212
      %s227 = sphi 0, %s213
      %s231 = sphi 0, %s231
      %s233 = sphi 0, %s231
      %s234 = sphi 0, %s233
      %s248 = sphi 0, %s234
      %s252 = sphi 0, %s252
      %s254 = sphi 0, %s252
      %s255 = sphi 0, %s254
      %s269 = sphi 0, %s255
      %s273 = sphi 0, %s273
      %s275 = sphi 0, %s273
      %s276 = sphi 0, %s275
      %s290 = sphi 0, %s276
      %s294 = sphi 0, %s294
      %s296 = sphi 0, %s294
      %s297 = sphi 0, %s296
      %s311 = sphi 0, %s297
      %s315 = sphi 0, %s315
      %s317 = sphi 0, %s315
      %s318 = sphi 0, %s317
      %s332 = sphi 0, %s318
      %s336 = sphi 0, %s336
      %s338 = sphi 0, %s336
      %s339 = sphi 0, %s338
      %s353 = sphi 0, %s339
      %s357 = sphi 0, %s357
      %s359 = sphi 0, %s357
      %s360 = sphi 0, %s359
      %s374 = sphi 0, %s360
      %s378 = sphi 0, %s378
      %s380 = sphi 0, %s378
      %s381 = sphi 0, %s380
      %s395 = sphi 0, %s381
      %s401 = sphi 0, %s403
      %s404 = sphi 0, %s401
      %s405 = sphi 0, %s404
      %s421 = sphi 0, %s405
    $region4: #{tpu_custom_call.1} parent=1 // loop_header_branch
      %36 = sbr.rel (%p34) target = $region8
    $region5: #{tpu_custom_call.1} parent=1 // loop_body
      %s38 = ssub.s32 %s33, 1
      %s39 = ssub.s32 %s33, 2
      %s46 = sadd.s32 1, %s41
      %p47 = scmp.ge.s32.totalorder %s46, 2
      %s48 = scalar_select %p47, 0, %s46
      %s49 = sadd.s32 1, %s40
      %s50 = scalar_select %p47, %s49, %s40
      %p51 = scmp.ge.s32.totalorder %s50, 2
      %s52 = scalar_select %p51, 0, %s50
      %s53 = ssub.s32 %s40, %s52
      %p54 = scmp.eq.s32.totalorder %s53, 0
      %s56 = sadd.s32 %s55, 1
      %s57 = scalar_select %p54, %s55, %s56
      %p60 = pneg %p54
      %p61 = scmp.eq.s32.totalorder %s33, 3
      %p62 = por %p60, %p61
      %p63 = scmp.ne.s32.totalorder %s55, %s58
      %p64 = scmp.eq.s32.totalorder %s33, 0
      %p65 = por %p63, %p64
      %p66 = scmp.ne.s32.totalorder %s55, %s58
      %p67 = scmp.eq.s32.totalorder %s38, 3
      %p68 = por %p66, %p67
      %p69 = scmp.ne.s32.totalorder %s58, %s59
      %p70 = scmp.eq.s32.totalorder %s38, 0
      %p71 = por %p69, %p70
      %p72 = scmp.ne.s32.totalorder %s58, %s59
      %p73 = scmp.eq.s32.totalorder %s39, 3
      %p74 = por %p72, %p73
      %p76 = scmp.ne.s32.totalorder %s59, %s75
      %p77 = scmp.eq.s32.totalorder %s39, 0
      %p78 = por %p76, %p77
      %s79 = ssub.s32 %s40, %s52
      %p80 = scmp.eq.s32.totalorder %s79, 0
      %s82 = sadd.s32 %s81, 1
      %s83 = scalar_select %p80, %s81, %s82
      %p86 = pneg %p80
      %p87 = scmp.eq.s32.totalorder %s33, 3
      %p88 = por %p86, %p87
      %p89 = scmp.ne.s32.totalorder %s81, %s84
      %p90 = scmp.eq.s32.totalorder %s33, 0
      %p91 = por %p89, %p90
      %p92 = scmp.ne.s32.totalorder %s81, %s84
      %p93 = scmp.eq.s32.totalorder %s38, 3
      %p94 = por %p92, %p93
      %p95 = scmp.ne.s32.totalorder %s84, %s85
      %p96 = scmp.eq.s32.totalorder %s38, 0
      %p97 = por %p95, %p96
      %p98 = scmp.ne.s32.totalorder %s84, %s85
      %p99 = scmp.eq.s32.totalorder %s39, 3
      %p100 = por %p98, %p99
      %p102 = scmp.ne.s32.totalorder %s85, %s101
      %p103 = scmp.eq.s32.totalorder %s39, 0
      %p104 = por %p102, %p103
      %s106 = sadd.s32 %s105, 1
      %p109 = scmp.eq.s32.totalorder %s33, 3
      %p110 = scmp.ne.s32.totalorder %s105, %s107
      %p111 = scmp.eq.s32.totalorder %s33, 0
      %p112 = por %p110, %p111
      %p113 = scmp.ne.s32.totalorder %s105, %s107
      %p114 = scmp.eq.s32.totalorder %s38, 3
      %p115 = por %p113, %p114
      %p116 = scmp.ne.s32.totalorder %s107, %s108
      %p117 = scmp.eq.s32.totalorder %s38, 0
      %p118 = por %p116, %p117
      %p119 = scmp.ne.s32.totalorder %s107, %s108
      %p120 = scmp.eq.s32.totalorder %s39, 3
      %p121 = por %p119, %p120
      %p123 = scmp.ne.s32.totalorder %s108, %s122
      %p124 = scmp.eq.s32.totalorder %s39, 0
      %p125 = por %p123, %p124
      %s127 = sadd.s32 %s126, 1
      %p130 = scmp.eq.s32.totalorder %s33, 3
      %p131 = scmp.ne.s32.totalorder %s126, %s128
      %p132 = scmp.eq.s32.totalorder %s33, 0
      %p133 = por %p131, %p132
      %p134 = scmp.ne.s32.totalorder %s126, %s128
      %p135 = scmp.eq.s32.totalorder %s38, 3
      %p136 = por %p134, %p135
      %p137 = scmp.ne.s32.totalorder %s128, %s129
      %p138 = scmp.eq.s32.totalorder %s38, 0
      %p139 = por %p137, %p138
      %p140 = scmp.ne.s32.totalorder %s128, %s129
      %p141 = scmp.eq.s32.totalorder %s39, 3
      %p142 = por %p140, %p141
      %p144 = scmp.ne.s32.totalorder %s129, %s143
      %p145 = scmp.eq.s32.totalorder %s39, 0
      %p146 = por %p144, %p145
      %s148 = sadd.s32 %s147, 1
      %p151 = scmp.eq.s32.totalorder %s33, 3
      %p152 = scmp.ne.s32.totalorder %s147, %s149
      %p153 = scmp.eq.s32.totalorder %s33, 0
      %p154 = por %p152, %p153
      %p155 = scmp.ne.s32.totalorder %s147, %s149
      %p156 = scmp.eq.s32.totalorder %s38, 3
      %p157 = por %p155, %p156
      %p158 = scmp.ne.s32.totalorder %s149, %s150
      %p159 = scmp.eq.s32.totalorder %s38, 0
      %p160 = por %p158, %p159
      %p161 = scmp.ne.s32.totalorder %s149, %s150
      %p162 = scmp.eq.s32.totalorder %s39, 3
      %p163 = por %p161, %p162
      %p165 = scmp.ne.s32.totalorder %s150, %s164
      %p166 = scmp.eq.s32.totalorder %s39, 0
      %p167 = por %p165, %p166
      %s169 = sadd.s32 %s168, 1
      %p172 = scmp.eq.s32.totalorder %s33, 3
      %p173 = scmp.ne.s32.totalorder %s168, %s170
      %p174 = scmp.eq.s32.totalorder %s33, 0
      %p175 = por %p173, %p174
      %p176 = scmp.ne.s32.totalorder %s168, %s170
      %p177 = scmp.eq.s32.totalorder %s38, 3
      %p178 = por %p176, %p177
      %p179 = scmp.ne.s32.totalorder %s170, %s171
      %p180 = scmp.eq.s32.totalorder %s38, 0
      %p181 = por %p179, %p180
      %p182 = scmp.ne.s32.totalorder %s170, %s171
      %p183 = scmp.eq.s32.totalorder %s39, 3
      %p184 = por %p182, %p183
      %p186 = scmp.ne.s32.totalorder %s171, %s185
      %p187 = scmp.eq.s32.totalorder %s39, 0
      %p188 = por %p186, %p187
      %s190 = sadd.s32 %s189, 1
      %p193 = scmp.eq.s32.totalorder %s33, 3
      %p194 = scmp.ne.s32.totalorder %s189, %s191
      %p195 = scmp.eq.s32.totalorder %s33, 0
      %p196 = por %p194, %p195
      %p197 = scmp.ne.s32.totalorder %s189, %s191
      %p198 = scmp.eq.s32.totalorder %s38, 3
      %p199 = por %p197, %p198
      %p200 = scmp.ne.s32.totalorder %s191, %s192
      %p201 = scmp.eq.s32.totalorder %s38, 0
      %p202 = por %p200, %p201
      %p203 = scmp.ne.s32.totalorder %s191, %s192
      %p204 = scmp.eq.s32.totalorder %s39, 3
      %p205 = por %p203, %p204
      %p207 = scmp.ne.s32.totalorder %s192, %s206
      %p208 = scmp.eq.s32.totalorder %s39, 0
      %p209 = por %p207, %p208
      %s211 = sadd.s32 %s210, 1
      %p214 = scmp.eq.s32.totalorder %s33, 3
      %p215 = scmp.ne.s32.totalorder %s210, %s212
      %p216 = scmp.eq.s32.totalorder %s33, 0
      %p217 = por %p215, %p216
      %p218 = scmp.ne.s32.totalorder %s210, %s212
      %p219 = scmp.eq.s32.totalorder %s38, 3
      %p220 = por %p218, %p219
      %p221 = scmp.ne.s32.totalorder %s212, %s213
      %p222 = scmp.eq.s32.totalorder %s38, 0
      %p223 = por %p221, %p222
      %p224 = scmp.ne.s32.totalorder %s212, %s213
      %p225 = scmp.eq.s32.totalorder %s39, 3
      %p226 = por %p224, %p225
      %p228 = scmp.ne.s32.totalorder %s213, %s227
      %p229 = scmp.eq.s32.totalorder %s39, 0
      %p230 = por %p228, %p229
      %s232 = sadd.s32 %s231, 1
      %p235 = scmp.eq.s32.totalorder %s33, 3
      %p236 = scmp.ne.s32.totalorder %s231, %s233
      %p237 = scmp.eq.s32.totalorder %s33, 0
      %p238 = por %p236, %p237
      %p239 = scmp.ne.s32.totalorder %s231, %s233
      %p240 = scmp.eq.s32.totalorder %s38, 3
      %p241 = por %p239, %p240
      %p242 = scmp.ne.s32.totalorder %s233, %s234
      %p243 = scmp.eq.s32.totalorder %s38, 0
      %p244 = por %p242, %p243
      %p245 = scmp.ne.s32.totalorder %s233, %s234
      %p246 = scmp.eq.s32.totalorder %s39, 3
      %p247 = por %p245, %p246
      %p249 = scmp.ne.s32.totalorder %s234, %s248
      %p250 = scmp.eq.s32.totalorder %s39, 0
      %p251 = por %p249, %p250
      %s253 = sadd.s32 %s252, 1
      %p256 = scmp.eq.s32.totalorder %s33, 3
      %p257 = scmp.ne.s32.totalorder %s252, %s254
      %p258 = scmp.eq.s32.totalorder %s33, 0
      %p259 = por %p257, %p258
      %p260 = scmp.ne.s32.totalorder %s252, %s254
      %p261 = scmp.eq.s32.totalorder %s38, 3
      %p262 = por %p260, %p261
      %p263 = scmp.ne.s32.totalorder %s254, %s255
      %p264 = scmp.eq.s32.totalorder %s38, 0
      %p265 = por %p263, %p264
      %p266 = scmp.ne.s32.totalorder %s254, %s255
      %p267 = scmp.eq.s32.totalorder %s39, 3
      %p268 = por %p266, %p267
      %p270 = scmp.ne.s32.totalorder %s255, %s269
      %p271 = scmp.eq.s32.totalorder %s39, 0
      %p272 = por %p270, %p271
      %s274 = sadd.s32 %s273, 1
      %p277 = scmp.eq.s32.totalorder %s33, 3
      %p278 = scmp.ne.s32.totalorder %s273, %s275
      %p279 = scmp.eq.s32.totalorder %s33, 0
      %p280 = por %p278, %p279
      %p281 = scmp.ne.s32.totalorder %s273, %s275
      %p282 = scmp.eq.s32.totalorder %s38, 3
      %p283 = por %p281, %p282
      %p284 = scmp.ne.s32.totalorder %s275, %s276
      %p285 = scmp.eq.s32.totalorder %s38, 0
      %p286 = por %p284, %p285
      %p287 = scmp.ne.s32.totalorder %s275, %s276
      %p288 = scmp.eq.s32.totalorder %s39, 3
      %p289 = por %p287, %p288
      %p291 = scmp.ne.s32.totalorder %s276, %s290
      %p292 = scmp.eq.s32.totalorder %s39, 0
      %p293 = por %p291, %p292
      %s295 = sadd.s32 %s294, 1
      %p298 = scmp.eq.s32.totalorder %s33, 3
      %p299 = scmp.ne.s32.totalorder %s294, %s296
      %p300 = scmp.eq.s32.totalorder %s33, 0
      %p301 = por %p299, %p300
      %p302 = scmp.ne.s32.totalorder %s294, %s296
      %p303 = scmp.eq.s32.totalorder %s38, 3
      %p304 = por %p302, %p303
      %p305 = scmp.ne.s32.totalorder %s296, %s297
      %p306 = scmp.eq.s32.totalorder %s38, 0
      %p307 = por %p305, %p306
      %p308 = scmp.ne.s32.totalorder %s296, %s297
      %p309 = scmp.eq.s32.totalorder %s39, 3
      %p310 = por %p308, %p309
      %p312 = scmp.ne.s32.totalorder %s297, %s311
      %p313 = scmp.eq.s32.totalorder %s39, 0
      %p314 = por %p312, %p313
      %s316 = sadd.s32 %s315, 1
      %p319 = scmp.eq.s32.totalorder %s33, 3
      %p320 = scmp.ne.s32.totalorder %s315, %s317
      %p321 = scmp.eq.s32.totalorder %s33, 0
      %p322 = por %p320, %p321
      %p323 = scmp.ne.s32.totalorder %s315, %s317
      %p324 = scmp.eq.s32.totalorder %s38, 3
      %p325 = por %p323, %p324
      %p326 = scmp.ne.s32.totalorder %s317, %s318
      %p327 = scmp.eq.s32.totalorder %s38, 0
      %p328 = por %p326, %p327
      %p329 = scmp.ne.s32.totalorder %s317, %s318
      %p330 = scmp.eq.s32.totalorder %s39, 3
      %p331 = por %p329, %p330
      %p333 = scmp.ne.s32.totalorder %s318, %s332
      %p334 = scmp.eq.s32.totalorder %s39, 0
      %p335 = por %p333, %p334
      %s337 = sadd.s32 %s336, 1
      %p340 = scmp.eq.s32.totalorder %s33, 3
      %p341 = scmp.ne.s32.totalorder %s336, %s338
      %p342 = scmp.eq.s32.totalorder %s33, 0
      %p343 = por %p341, %p342
      %p344 = scmp.ne.s32.totalorder %s336, %s338
      %p345 = scmp.eq.s32.totalorder %s38, 3
      %p346 = por %p344, %p345
      %p347 = scmp.ne.s32.totalorder %s338, %s339
      %p348 = scmp.eq.s32.totalorder %s38, 0
      %p349 = por %p347, %p348
      %p350 = scmp.ne.s32.totalorder %s338, %s339
      %p351 = scmp.eq.s32.totalorder %s39, 3
      %p352 = por %p350, %p351
      %p354 = scmp.ne.s32.totalorder %s339, %s353
      %p355 = scmp.eq.s32.totalorder %s39, 0
      %p356 = por %p354, %p355
      %s358 = sadd.s32 %s357, 1
      %p361 = scmp.eq.s32.totalorder %s33, 3
      %p362 = scmp.ne.s32.totalorder %s357, %s359
      %p363 = scmp.eq.s32.totalorder %s33, 0
      %p364 = por %p362, %p363
      %p365 = scmp.ne.s32.totalorder %s357, %s359
      %p366 = scmp.eq.s32.totalorder %s38, 3
      %p367 = por %p365, %p366
      %p368 = scmp.ne.s32.totalorder %s359, %s360
      %p369 = scmp.eq.s32.totalorder %s38, 0
      %p370 = por %p368, %p369
      %p371 = scmp.ne.s32.totalorder %s359, %s360
      %p372 = scmp.eq.s32.totalorder %s39, 3
      %p373 = por %p371, %p372
      %p375 = scmp.ne.s32.totalorder %s360, %s374
      %p376 = scmp.eq.s32.totalorder %s39, 0
      %p377 = por %p375, %p376
      %s379 = sadd.s32 %s378, 1
      %p382 = scmp.eq.s32.totalorder %s33, 3
      %p383 = scmp.ne.s32.totalorder %s378, %s380
      %p384 = scmp.eq.s32.totalorder %s33, 0
      %p385 = por %p383, %p384
      %p386 = scmp.ne.s32.totalorder %s378, %s380
      %p387 = scmp.eq.s32.totalorder %s38, 3
      %p388 = por %p386, %p387
      %p389 = scmp.ne.s32.totalorder %s380, %s381
      %p390 = scmp.eq.s32.totalorder %s38, 0
      %p391 = por %p389, %p390
      %p392 = scmp.ne.s32.totalorder %s380, %s381
      %p393 = scmp.eq.s32.totalorder %s39, 3
      %p394 = por %p392, %p393
      %p396 = scmp.ne.s32.totalorder %s381, %s395
      %p397 = scmp.eq.s32.totalorder %s39, 0
      %p398 = por %p396, %p397
      %s399 = ssub.s32 %s40, %s52
      %p400 = scmp.eq.s32.totalorder %s399, 0
      %s402 = sadd.s32 %s401, 1
      %s403 = scalar_select %p400, %s401, %s402
      %p406 = pneg %p400
      %p407 = scmp.eq.s32.totalorder %s33, 3
      %p408 = por %p406, %p407
      %p409 = scmp.ne.s32.totalorder %s401, %s404
      %p410 = scmp.eq.s32.totalorder %s33, 0
      %p411 = por %p409, %p410
      %p412 = scmp.ne.s32.totalorder %s401, %s404
      %p413 = scmp.eq.s32.totalorder %s38, 3
      %p414 = por %p412, %p413
      %p415 = scmp.ne.s32.totalorder %s404, %s405
      %p416 = scmp.eq.s32.totalorder %s38, 0
      %p417 = por %p415, %p416
      %p418 = scmp.ne.s32.totalorder %s404, %s405
      %p419 = scmp.eq.s32.totalorder %s39, 3
      %p420 = por %p418, %p419
      %p422 = scmp.ne.s32.totalorder %s405, %s421
      %p423 = scmp.eq.s32.totalorder %s39, 0
      %p424 = por %p422, %p423
      %p425 = scmp.le.s32.totalorder 1, %s33
      %p426 = scmp.lt.s32.totalorder %s33, 5
      %p427 = pnand %p425, %p426
      %p428 = pneg %p427
      // Predicated region
      $region9: #{tpu_custom_call.1} parent=5 // pred_check
        _
      $region10: #{tpu_custom_call.1} parent=5 // pred_check_branch
        %430 = sbr.rel (%p427) target = $region12
      $region11: #{tpu_custom_call.1} parent=5 // pred_region
        %s431 = ssub.s32 %s33, 1
        // Predicated region
        $region13: #{tpu_custom_call.1} parent=11 // pred_check
          %p432 = pneg %p118
        $region14: #{tpu_custom_call.1} parent=11 // pred_check_branch
          %434 = sbr.rel (%p432) target = $region16
        $region15: #{tpu_custom_call.1} parent=11 // pred_region
          %s436 = ssub.s32 4096, 4096
          %437 = vsyncadd [#allocation7], %s436
          %s438 = sshll.u32 [#allocation8], 4
          %s439 = int_to_ptr.vmem [resolvable:$true] %s438
          %444 = dma.hbm_to_vmem [thread:$0]  %s2, 4096, %s439, [#allocation7], 128, 128, 8
        $region16: #{tpu_custom_call.1} parent=11 // pred_fallthru
          _
        // Predicated region
        $region17: #{tpu_custom_call.1} parent=11 // pred_check
          %p445 = pneg %p139
        $region18: #{tpu_custom_call.1} parent=11 // pred_check_branch
          %447 = sbr.rel (%p445) target = $region20
        $region19: #{tpu_custom_call.1} parent=11 // pred_region
          _
        $region20: #{tpu_custom_call.1} parent=11 // pred_fallthru
          _
        // Predicated region
        $region21: #{tpu_custom_call.1} parent=11 // pred_check
          %p448 = pneg %p160
        $region22: #{tpu_custom_call.1} parent=11 // pred_check_branch
          %450 = sbr.rel (%p448) target = $region24
        $region23: #{tpu_custom_call.1} parent=11 // pred_region
          %s452 = ssub.s32 2048, 2048
          %453 = vsyncadd [#allocation10], %s452
          %s454 = sshll.u32 [#allocation9], 4
          %s455 = int_to_ptr.vmem [resolvable:$true] %s454
          %460 = dma.hbm_to_vmem [thread:$0]  %s4, 2048, %s455, [#allocation10], 64, 64, 4
        $region24: #{tpu_custom_call.1} parent=11 // pred_fallthru
          _
        // Predicated region
        $region25: #{tpu_custom_call.1} parent=11 // pred_check
          %p461 = pneg %p181
        $region26: #{tpu_custom_call.1} parent=11 // pred_check_branch
          %463 = sbr.rel (%p461) target = $region28
        $region27: #{tpu_custom_call.1} parent=11 // pred_region
          _
        $region28: #{tpu_custom_call.1} parent=11 // pred_fallthru
          _
        // Predicated region
        $region29: #{tpu_custom_call.1} parent=11 // pred_check
          %p464 = pneg %p202
        $region30: #{tpu_custom_call.1} parent=11 // pred_check_branch
          %466 = sbr.rel (%p464) target = $region32
        $region31: #{tpu_custom_call.1} parent=11 // pred_region
          %s468 = ssub.s32 2048, 2048
          %469 = vsyncadd [#allocation10], %s468
          %s470 = sshll.u32 [#allocation11], 4
          %s471 = int_to_ptr.vmem [resolvable:$true] %s470
          %476 = dma.hbm_to_vmem [thread:$0]  %s6, 2048, %s471, [#allocation10], 64, 64, 4
        $region32: #{tpu_custom_call.1} parent=11 // pred_fallthru
          _
        // Predicated region
        $region33: #{tpu_custom_call.1} parent=11 // pred_check
          %p477 = pneg %p223
        $region34: #{tpu_custom_call.1} parent=11 // pred_check_branch
          %479 = sbr.rel (%p477) target = $region36
        $region35: #{tpu_custom_call.1} parent=11 // pred_region
          _
        $region36: #{tpu_custom_call.1} parent=11 // pred_fallthru
          _
        // Predicated region
        $region37: #{tpu_custom_call.1} parent=11 // pred_check
          %p480 = pneg %p244
        $region38: #{tpu_custom_call.1} parent=11 // pred_check_branch
          %482 = sbr.rel (%p480) target = $region40
        $region39: #{tpu_custom_call.1} parent=11 // pred_region
          %s484 = ssub.s32 4096, 4096
          %485 = vsyncadd [#allocation13], %s484
          %s486 = sshll.u32 [#allocation12], 4
          %s487 = int_to_ptr.vmem [resolvable:$true] %s486
          %492 = dma.hbm_to_vmem [thread:$0]  %s8, 4096, %s487, [#allocation13], 128, 128, 8
        $region40: #{tpu_custom_call.1} parent=11 // pred_fallthru
          _
        // Predicated region
        $region41: #{tpu_custom_call.1} parent=11 // pred_check
          %p493 = pneg %p265
        $region42: #{tpu_custom_call.1} parent=11 // pred_check_branch
          %495 = sbr.rel (%p493) target = $region44
        $region43: #{tpu_custom_call.1} parent=11 // pred_region
          _
        $region44: #{tpu_custom_call.1} parent=11 // pred_fallthru
          _
        // Predicated region
        $region45: #{tpu_custom_call.1} parent=11 // pred_check
          %p496 = pneg %p286
        $region46: #{tpu_custom_call.1} parent=11 // pred_check_branch
          %498 = sbr.rel (%p496) target = $region48
        $region47: #{tpu_custom_call.1} parent=11 // pred_region
          %s500 = ssub.s32 4096, 4096
          %501 = vsyncadd [#allocation13], %s500
          %s502 = sshll.u32 [#allocation14], 4
          %s503 = int_to_ptr.vmem [resolvable:$true] %s502
          %508 = dma.hbm_to_vmem [thread:$0]  %s10, 4096, %s503, [#allocation13], 64, 64, 4
        $region48: #{tpu_custom_call.1} parent=11 // pred_fallthru
          _
        // Predicated region
        $region49: #{tpu_custom_call.1} parent=11 // pred_check
          %p509 = pneg %p307
        $region50: #{tpu_custom_call.1} parent=11 // pred_check_branch
          %511 = sbr.rel (%p509) target = $region52
        $region51: #{tpu_custom_call.1} parent=11 // pred_region
          _
        $region52: #{tpu_custom_call.1} parent=11 // pred_fallthru
          _
        // Predicated region
        $region53: #{tpu_custom_call.1} parent=11 // pred_check
          %p512 = pneg %p328
        $region54: #{tpu_custom_call.1} parent=11 // pred_check_branch
          %514 = sbr.rel (%p512) target = $region56
        $region55: #{tpu_custom_call.1} parent=11 // pred_region
          _
        $region56: #{tpu_custom_call.1} parent=11 // pred_fallthru
          _
        // Predicated region
        $region57: #{tpu_custom_call.1} parent=11 // pred_check
          %p515 = pneg %p349
        $region58: #{tpu_custom_call.1} parent=11 // pred_check_branch
          %517 = sbr.rel (%p515) target = $region60
        $region59: #{tpu_custom_call.1} parent=11 // pred_region
          _
        $region60: #{tpu_custom_call.1} parent=11 // pred_fallthru
          _
        // Predicated region
        $region61: #{tpu_custom_call.1} parent=11 // pred_check
          %p518 = pneg %p370
        $region62: #{tpu_custom_call.1} parent=11 // pred_check_branch
          %520 = sbr.rel (%p518) target = $region64
        $region63: #{tpu_custom_call.1} parent=11 // pred_region
          _
        $region64: #{tpu_custom_call.1} parent=11 // pred_fallthru
          _
        // Predicated region
        $region65: #{tpu_custom_call.1} parent=11 // pred_check
          %p521 = pneg %p391
        $region66: #{tpu_custom_call.1} parent=11 // pred_check_branch
          %523 = sbr.rel (%p521) target = $region68
        $region67: #{tpu_custom_call.1} parent=11 // pred_region
          _
        $region68: #{tpu_custom_call.1} parent=11 // pred_fallthru
          _
      $region12: #{tpu_custom_call.1} parent=5 // pred_fallthru
        _
      %p524 = scmp.lt.s32.totalorder %s33, 4
      // Predicated region
      $region69: #{tpu_custom_call.1} parent=5 // pred_check
        %p525 = pneg %p524
      $region70: #{tpu_custom_call.1} parent=5 // pred_check_branch
        %527 = sbr.rel (%p525) target = $region72
      $region71: #{tpu_custom_call.1} parent=5 // pred_region
        // Predicated region
        $region73: #{tpu_custom_call.1} parent=71 // pred_check
          %p528 = pneg %p65
        $region74: #{tpu_custom_call.1} parent=71 // pred_check_branch
          %530 = sbr.rel (%p528) target = $region76
        $region75: #{tpu_custom_call.1} parent=71 // pred_region
          %s531 = sand.u32 %s55, 1
          %s532 = scalar_lea.sflag [#allocation4], %s531
          %s533 = sand.u32 %s55, 1
          %s534 = smul.addr %s533, 16
          %s535 = scalar_lea.vmem [#allocation3], %s534
          %s537 = ssub.s32 256, 256
          %538 = vsyncadd %s532, %s537
          %s539 = smul.addr %s40, 2
          %s540 = smul.addr %s539, 128
          %s541 = scalar_lea.hbm %s0, %s540
          %s542 = sshll.u32 %s535, 4
          %s543 = int_to_ptr.vmem [resolvable:$true] %s542
          %548 = dma.hbm_to_vmem [thread:$0]  %s541, 256, %s543, %s532, 128, 128, 8
        $region76: #{tpu_custom_call.1} parent=71 // pred_fallthru
          _
        // Predicated region
        $region77: #{tpu_custom_call.1} parent=71 // pred_check
          %p549 = pneg %p91
        $region78: #{tpu_custom_call.1} parent=71 // pred_check_branch
          %551 = sbr.rel (%p549) target = $region80
        $region79: #{tpu_custom_call.1} parent=71 // pred_region
          %s552 = sand.u32 %s33, 1
          %s553 = scalar_lea.sflag [#allocation7], %s552
          %s554 = sand.u32 %s81, 1
          %s555 = smul.addr %s554, 16
          %s556 = scalar_lea.vmem [#allocation6], %s555
          %s558 = ssub.s32 256, 256
          %559 = vsyncadd %s553, %s558
          %s560 = smul.addr %s40, 2
          %s561 = smul.addr %s560, 128
          %s562 = scalar_lea.hbm %s1, %s561
          %s563 = sshll.u32 %s556, 4
          %s564 = int_to_ptr.vmem [resolvable:$true] %s563
          %569 = dma.hbm_to_vmem [thread:$0]  %s562, 256, %s564, %s553, 128, 128, 8
        $region80: #{tpu_custom_call.1} parent=71 // pred_fallthru
          _
      $region72: #{tpu_custom_call.1} parent=5 // pred_fallthru
        _
      %p570 = scmp.le.s32.totalorder 1, %s33
      %p571 = scmp.lt.s32.totalorder %s33, 5
      %p572 = pnand %p570, %p571
      %p573 = pneg %p572
      // Predicated region
      $region81: #{tpu_custom_call.1} parent=5 // pred_check
        _
      $region82: #{tpu_custom_call.1} parent=5 // pred_check_branch
        %575 = sbr.rel (%p572) target = $region84
      $region83: #{tpu_custom_call.1} parent=5 // pred_region
        %s576 = ssub.s32 %s33, 1
        %s577 = sand.u32 %s58, 1
        %s578 = scalar_lea.sflag [#allocation4], %s577
        %s579 = sand.u32 %s58, 1
        %s580 = smul.addr %s579, 16
        %s581 = scalar_lea.vmem [#allocation3], %s580
        // Predicated region
        $region85: #{tpu_custom_call.1} parent=83 // pred_check
          %p582 = pneg %p71
        $region86: #{tpu_custom_call.1} parent=83 // pred_check_branch
          %584 = sbr.rel (%p582) target = $region88
        $region87: #{tpu_custom_call.1} parent=83 // pred_region
          %585 = dma.done %s578, 256
        $region88: #{tpu_custom_call.1} parent=83 // pred_fallthru
          _
        %s586 = sand.u32 %s38, 1
        %s587 = scalar_lea.sflag [#allocation7], %s586
        %s588 = sand.u32 %s84, 1
        %s589 = smul.addr %s588, 16
        %s590 = scalar_lea.vmem [#allocation6], %s589
        // Predicated region
        $region89: #{tpu_custom_call.1} parent=83 // pred_check
          %p591 = pneg %p97
        $region90: #{tpu_custom_call.1} parent=83 // pred_check_branch
          %593 = sbr.rel (%p591) target = $region92
        $region91: #{tpu_custom_call.1} parent=83 // pred_region
          %594 = dma.done %s587, 256
        $region92: #{tpu_custom_call.1} parent=83 // pred_fallthru
          _
        // Predicated region
        $region93: #{tpu_custom_call.1} parent=83 // pred_check
          %p595 = pneg %p118
        $region94: #{tpu_custom_call.1} parent=83 // pred_check_branch
          %597 = sbr.rel (%p595) target = $region96
        $region95: #{tpu_custom_call.1} parent=83 // pred_region
          %598 = dma.done [#allocation7], 4096
        $region96: #{tpu_custom_call.1} parent=83 // pred_fallthru
          _
        // Predicated region
        $region97: #{tpu_custom_call.1} parent=83 // pred_check
          %p599 = pneg %p160
        $region98: #{tpu_custom_call.1} parent=83 // pred_check_branch
          %601 = sbr.rel (%p599) target = $region100
        $region99: #{tpu_custom_call.1} parent=83 // pred_region
          %602 = dma.done [#allocation10], 2048
        $region100: #{tpu_custom_call.1} parent=83 // pred_fallthru
          _
        // Predicated region
        $region101: #{tpu_custom_call.1} parent=83 // pred_check
          %p603 = pneg %p202
        $region102: #{tpu_custom_call.1} parent=83 // pred_check_branch
          %605 = sbr.rel (%p603) target = $region104
        $region103: #{tpu_custom_call.1} parent=83 // pred_region
          %606 = dma.done [#allocation10], 2048
        $region104: #{tpu_custom_call.1} parent=83 // pred_fallthru
          _
        // Predicated region
        $region105: #{tpu_custom_call.1} parent=83 // pred_check
          %p607 = pneg %p244
        $region106: #{tpu_custom_call.1} parent=83 // pred_check_branch
          %609 = sbr.rel (%p607) target = $region108
        $region107: #{tpu_custom_call.1} parent=83 // pred_region
          %610 = dma.done [#allocation13], 4096
        $region108: #{tpu_custom_call.1} parent=83 // pred_fallthru
          _
        // Predicated region
        $region109: #{tpu_custom_call.1} parent=83 // pred_check
          %p611 = pneg %p286
        $region110: #{tpu_custom_call.1} parent=83 // pred_check_branch
          %613 = sbr.rel (%p611) target = $region112
        $region111: #{tpu_custom_call.1} parent=83 // pred_region
          %614 = dma.done [#allocation13], 4096
        $region112: #{tpu_custom_call.1} parent=83 // pred_fallthru
          _
        %s615 = sand.u32 %s58, 1
        %s616 = scalar_lea.sflag [#allocation4], %s615
        %s617 = sand.u32 %s58, 1
        %s618 = smul.addr %s617, 16
        %s619 = scalar_lea.vmem [#allocation3], %s618
        %p620 = pneg %p71
        %p621 = pneg %p68
        %s622 = sand.u32 %s38, 1
        %s623 = scalar_lea.sflag [#allocation7], %s622
        %s624 = sand.u32 %s84, 1
        %s625 = smul.addr %s624, 16
        %s626 = scalar_lea.vmem [#allocation6], %s625
        %p627 = pneg %p97
        %p628 = pneg %p94
        %p629 = pneg %p118
        %p630 = pneg %p115
        %p631 = pneg %p139
        %p632 = pneg %p136
        %p633 = pneg %p160
        %p634 = pneg %p157
        %p635 = pneg %p181
        %p636 = pneg %p178
        %p637 = pneg %p202
        %p638 = pneg %p199
        %p639 = pneg %p223
        %p640 = pneg %p220
        %p641 = pneg %p244
        %p642 = pneg %p241
        %p643 = pneg %p265
        %p644 = pneg %p262
        %p645 = pneg %p286
        %p646 = pneg %p283
        %p647 = pneg %p307
        %p648 = pneg %p304
        %p649 = pneg %p328
        %p650 = pneg %p325
        %p651 = pneg %p349
        %p652 = pneg %p346
        %p653 = pneg %p370
        %p654 = pneg %p367
        %p655 = pneg %p391
        %p656 = pneg %p388
        %p657 = pneg %p417
        %p658 = pneg %p414
        %s659 = sand.u32 %s404, 1
        %s660 = scalar_lea.sflag [#allocation5], %s659
        %s661 = sand.u32 %s404, 1
        %s662 = smul.addr %s661, 16
        %s663 = scalar_lea.vmem [#allocation15], %s662
        %p665 = scmp.eq.s32.totalorder %s43, 0
        // Predicated region
        $region113: #{tpu_custom_call.1} parent=83 // pred_check
          %p666 = pneg %p665
        $region114: #{tpu_custom_call.1} parent=83 // pred_check_branch
          %668 = sbr.rel (%p666) target = $region116
        $region115: #{tpu_custom_call.1} parent=83 // pred_region
          %v669 = vld [vmem:[%s581] sm:$0xff]
          %v670 = vld [vmem:[%s581 + $0x8] sm:$0xff]
          %671 = vst [vmem:[#allocation2] sm:$0xff] %v669
          %672 = vst [vmem:[#allocation2 + $0x8] sm:$0xff] %v670
        $region116: #{tpu_custom_call.1} parent=83 // pred_fallthru
          _
        %v673 = vld [vmem:[#allocation2] sm:$0xff]
        %v674 = vld [vmem:[#allocation2 + $0x8] sm:$0xff]
        %v675 = vld [vmem:[%s590] sm:$0xff]
        %v676 = vld [vmem:[%s590 + $0x8] sm:$0xff]
        %v677 = vadd.f32 %v673, %v675
        %v678 = vadd.f32 %v674, %v676
        %v679 = vpack.c.bf16 %v678, %v677
        %s680 = smul.u32 %s43, 32
        %s681 = smul.addr %s680, 4
        %s682 = scalar_lea.vmem [#allocation8], %s681
        %v683 = vld [vmem:[%s682] sm:$0xff]
        %v684 = vld [vmem:[%s682 + $0x8] sm:$0xff]
        %v685 = vld [vmem:[%s682 + $0x10] sm:$0xff]
        %v686 = vld [vmem:[%s682 + $0x18] sm:$0xff]
        %v687 = vld [vmem:[%s682 + $0x20] sm:$0xff]
        %v688 = vld [vmem:[%s682 + $0x28] sm:$0xff]
        %v689 = vld [vmem:[%s682 + $0x30] sm:$0xff]
        %v690 = vld [vmem:[%s682 + $0x38] sm:$0xff]
        %v691 = vld [vmem:[%s682 + $0x40] sm:$0xff]
        %v692 = vld [vmem:[%s682 + $0x48] sm:$0xff]
        %v693 = vld [vmem:[%s682 + $0x50] sm:$0xff]
        %v694 = vld [vmem:[%s682 + $0x58] sm:$0xff]
        %v695 = vld [vmem:[%s682 + $0x60] sm:$0xff]
        %v696 = vld [vmem:[%s682 + $0x68] sm:$0xff]
        %v697 = vld [vmem:[%s682 + $0x70] sm:$0xff]
        %v698 = vld [vmem:[%s682 + $0x78] sm:$0xff]
        %s699 = smul.u32 %s43, 2
        %s700 = scalar_lea.vmem %s3, %s699
        %v701 = vld [vmem:[%s700] sm:$0x3]
        %v703 = vlaneseq
        %v704 = vshrl.u32 %v703, 7
        %v705 = vsub.s32 0, %v704
        %v706 = vrot.slane %v701, %v705
        %v707 = vlaneseq
        %v708 = vshrl.u32 %v707, 7
        %v709 = vsub.s32 1, %v708
        %v710 = vrot.slane %v701, %v709
        %v729 = vunpack.c.l.b16 %v683
        %v730 = vunpack.c.h.b16 %v683
        %v731 = vunpack.c.l.b16 %v684
        %v732 = vunpack.c.h.b16 %v684
        %v733 = vunpack.c.l.b16 %v685
        %v734 = vunpack.c.h.b16 %v685
        %v735 = vunpack.c.l.b16 %v686
        %v736 = vunpack.c.h.b16 %v686
        %v737 = vunpack.c.l.b16 %v687
        %v738 = vunpack.c.h.b16 %v687
        %v739 = vunpack.c.l.b16 %v688
        %v740 = vunpack.c.h.b16 %v688
        %v741 = vunpack.c.l.b16 %v689
        %v742 = vunpack.c.h.b16 %v689
        %v743 = vunpack.c.l.b16 %v690
        %v744 = vunpack.c.h.b16 %v690
        %v745 = vunpack.c.l.b16 %v691
        %v746 = vunpack.c.h.b16 %v691
        %v747 = vunpack.c.l.b16 %v692
        %v748 = vunpack.c.h.b16 %v692
        %v749 = vunpack.c.l.b16 %v693
        %v750 = vunpack.c.h.b16 %v693
        %v751 = vunpack.c.l.b16 %v694
        %v752 = vunpack.c.h.b16 %v694
        %v753 = vunpack.c.l.b16 %v695
        %v754 = vunpack.c.h.b16 %v695
        %v755 = vunpack.c.l.b16 %v696
        %v756 = vunpack.c.h.b16 %v696
        %v757 = vunpack.c.l.b16 %v697
        %v758 = vunpack.c.h.b16 %v697
        %v759 = vunpack.c.l.b16 %v698
        %v760 = vunpack.c.h.b16 %v698
        %v761 = vpack.c.b16 %v731, %v729
        %v762 = vpack.c.b16 %v732, %v730
        %v763 = vpack.c.b16 %v735, %v733
        %v764 = vpack.c.b16 %v736, %v734
        %v765 = vpack.c.b16 %v739, %v737
        %v766 = vpack.c.b16 %v740, %v738
        %v767 = vpack.c.b16 %v743, %v741
        %v768 = vpack.c.b16 %v744, %v742
        %v769 = vpack.c.b16 %v747, %v745
        %v770 = vpack.c.b16 %v748, %v746
        %v771 = vpack.c.b16 %v751, %v749
        %v772 = vpack.c.b16 %v752, %v750
        %v773 = vpack.c.b16 %v755, %v753
        %v774 = vpack.c.b16 %v756, %v754
        %v775 = vpack.c.b16 %v759, %v757
        %v776 = vpack.c.b16 %v760, %v758
        %793 = vmatprep.subr.bf16.mxu0 %v762
        %794 = vmatpush1.bf16.msra.mxu0 %v761
        %795 = vmatprep.subr.bf16.mxu0 %v764
        %796 = vmatpush1.bf16.msra.mxu0 %v763
        %797 = vmatprep.subr.bf16.mxu0 %v766
        %798 = vmatpush1.bf16.msra.mxu0 %v765
        %799 = vmatprep.subr.bf16.mxu0 %v768
        %800 = vmatpush1.bf16.msra.mxu0 %v767
        %801 = vmatprep.subr.bf16.mxu0 %v770
        %802 = vmatpush1.bf16.msra.mxu0 %v769
        %803 = vmatprep.subr.bf16.mxu0 %v772
        %804 = vmatpush1.bf16.msra.mxu0 %v771
        %805 = vmatprep.subr.bf16.mxu0 %v774
        %806 = vmatpush1.bf16.msra.mxu0 %v773
        %807 = vmatprep.subr.bf16.mxu0 %v776
        %808 = vmatpush1.bf16.msra.mxu0 %v775
        %809 = vmatprep.subr.bf16.mxu0 0
        %810 = vmatpush1.bf16.msra.mxu0 0
        %811 = vmatprep.subr.bf16.mxu0 0
        %812 = vmatpush1.bf16.msra.mxu0 0
        %813 = vmatprep.subr.bf16.mxu0 0
        %814 = vmatpush1.bf16.msra.mxu0 0
        %815 = vmatprep.subr.bf16.mxu0 0
        %816 = vmatpush1.bf16.msra.mxu0 0
        %817 = vmatprep.subr.bf16.mxu0 0
        %818 = vmatpush1.bf16.msra.mxu0 0
        %819 = vmatprep.subr.bf16.mxu0 0
        %820 = vmatpush1.bf16.msra.mxu0 0
        %821 = vmatprep.subr.bf16.mxu0 0
        %822 = vmatpush1.bf16.msra.mxu0 0
        %823 = vmatprep.subr.bf16.mxu0 0
        %824 = vmatpush1.bf16.msra.mxu0 0
        %825 = vmatprep.mubr.bf16.mxu0 0
        %826 = vmatmul.mubr.bf16.gmra.mrb[0].mxu0 %v679
        %v827 = vpop.f32.mrb[0].mxu0
        %v828 = vadd.f32 %v706, %v827
        %v829 = vpop.f32.mrb[0].mxu0
        %v830 = vadd.f32 %v710, %v829
        %v831 = vpop.f32.mrb[0].mxu0
        %v832 = vadd.f32 %v706, %v831
        %v833 = vpop.f32.mrb[0].mxu0
        %v834 = vadd.f32 %v710, %v833
        %835 = vdwg.mxu0
        %v836 = vpack.c.bf16 %v674, %v673
        %s837 = smul.u32 %s43, 16
        %s838 = smul.addr %s837, 4
        %s839 = scalar_lea.vmem [#allocation9], %s838
        %v840 = vld [vmem:[%s839] sm:$0xf]
        %v841 = vld [vmem:[%s839 + $0x4] sm:$0xf]
        %v842 = vld [vmem:[%s839 + $0x8] sm:$0xf]
        %v843 = vld [vmem:[%s839 + $0xc] sm:$0xf]
        %v844 = vld [vmem:[%s839 + $0x10] sm:$0xf]
        %v845 = vld [vmem:[%s839 + $0x14] sm:$0xf]
        %v846 = vld [vmem:[%s839 + $0x18] sm:$0xf]
        %v847 = vld [vmem:[%s839 + $0x1c] sm:$0xf]
        %v848 = vld [vmem:[%s839 + $0x20] sm:$0xf]
        %v849 = vld [vmem:[%s839 + $0x24] sm:$0xf]
        %v850 = vld [vmem:[%s839 + $0x28] sm:$0xf]
        %v851 = vld [vmem:[%s839 + $0x2c] sm:$0xf]
        %v852 = vld [vmem:[%s839 + $0x30] sm:$0xf]
        %v853 = vld [vmem:[%s839 + $0x34] sm:$0xf]
        %v854 = vld [vmem:[%s839 + $0x38] sm:$0xf]
        %v855 = vld [vmem:[%s839 + $0x3c] sm:$0xf]
        %s856 = scalar_lea.vmem %s5, %s43
        %v857 = vld [vmem:[%s856] sm:$0x1]
        %v859 = vlaneseq
        %v860 = vshrl.u32 %v859, 7
        %v861 = vsub.s32 0, %v860
        %v862 = vrot.slane %v857, %v861
        %v880 = vunpack.c.l.b16 %v840
        %v881 = vunpack.c.l.b16 %v841
        %v882 = vunpack.c.l.b16 %v842
        %v883 = vunpack.c.l.b16 %v843
        %v884 = vunpack.c.l.b16 %v844
        %v885 = vunpack.c.l.b16 %v845
        %v886 = vunpack.c.l.b16 %v846
        %v887 = vunpack.c.l.b16 %v847
        %v888 = vunpack.c.l.b16 %v848
        %v889 = vunpack.c.l.b16 %v849
        %v890 = vunpack.c.l.b16 %v850
        %v891 = vunpack.c.l.b16 %v851
        %v892 = vunpack.c.l.b16 %v852
        %v893 = vunpack.c.l.b16 %v853
        %v894 = vunpack.c.l.b16 %v854
        %v895 = vunpack.c.l.b16 %v855
        %v896 = vpack.c.b16 %v881, %v880
        %v897 = vpack.c.b16 %v883, %v882
        %v898 = vpack.c.b16 %v885, %v884
        %v899 = vpack.c.b16 %v887, %v886
        %v900 = vpack.c.b16 %v889, %v888
        %v901 = vpack.c.b16 %v891, %v890
        %v902 = vpack.c.b16 %v893, %v892
        %v903 = vpack.c.b16 %v895, %v894
        %912 = vmatprep.subr.bf16.mxu0 0
        %913 = vmatpush1.bf16.msra.mxu0 %v896
        %914 = vmatprep.subr.bf16.mxu0 0
        %915 = vmatpush1.bf16.msra.mxu0 %v897
        %916 = vmatprep.subr.bf16.mxu0 0
        %917 = vmatpush1.bf16.msra.mxu0 %v898
        %918 = vmatprep.subr.bf16.mxu0 0
        %919 = vmatpush1.bf16.msra.mxu0 %v899
        %920 = vmatprep.subr.bf16.mxu0 0
        %921 = vmatpush1.bf16.msra.mxu0 %v900
        %922 = vmatprep.subr.bf16.mxu0 0
        %923 = vmatpush1.bf16.msra.mxu0 %v901
        %924 = vmatprep.subr.bf16.mxu0 0
        %925 = vmatpush1.bf16.msra.mxu0 %v902
        %926 = vmatprep.subr.bf16.mxu0 0
        %927 = vmatpush1.bf16.msra.mxu0 %v903
        %928 = vmatprep.subr.bf16.mxu0 0
        %929 = vmatpush1.bf16.msra.mxu0 0
        %930 = vmatprep.subr.bf16.mxu0 0
        %931 = vmatpush1.bf16.msra.mxu0 0
        %932 = vmatprep.subr.bf16.mxu0 0
        %933 = vmatpush1.bf16.msra.mxu0 0
        %934 = vmatprep.subr.bf16.mxu0 0
        %935 = vmatpush1.bf16.msra.mxu0 0
        %936 = vmatprep.subr.bf16.mxu0 0
        %937 = vmatpush1.bf16.msra.mxu0 0
        %938 = vmatprep.subr.bf16.mxu0 0
        %939 = vmatpush1.bf16.msra.mxu0 0
        %940 = vmatprep.subr.bf16.mxu0 0
        %941 = vmatpush1.bf16.msra.mxu0 0
        %942 = vmatprep.subr.bf16.mxu0 0
        %943 = vmatpush1.bf16.msra.mxu0 0
        %944 = vmatprep.mubr.bf16.mxu0 0
        %945 = vmatmul.mubr.bf16.gmra.mrb[0].mxu0 %v836
        %v946 = vpop.f32.mrb[0].mxu0
        %v947 = vadd.f32 %v862, %v946
        %v948 = vpop.f32.mrb[0].mxu0
        %v949 = vpop.f32.mrb[0].mxu0
        %v950 = vadd.f32 %v862, %v949
        %v951 = vpop.f32.mrb[0].mxu0
        %952 = vdwg.mxu0
        %v953 = vpack.c.bf16 %v832, %v828
        %v954 = vpack.c.bf16 %v834, %v830
        %v955 = vpack.c.bf16 %v950, %v947
        %vm956 = vcmask 261120
        %v958 = vsel %vm956, %v953, 0
        %v961 = vsel %vm956, %v954, 0
        %963 = vmatprep.subr.bf16.mxu0 0
        %964 = vmatpush1.bf16.xpose.msra.mxu0 %v961
        %965 = vmatprep.subr.bf16.mxu0 0
        %966 = vmatpush1.bf16.xpose.msra.mxu0 0
        %967 = vmatprep.subr.bf16.mxu0 0
        %968 = vmatpush1.bf16.xpose.msra.mxu0 0
        %969 = vmatprep.subr.bf16.mxu0 0
        %970 = vmatpush1.bf16.xpose.msra.mxu0 0
        %971 = vmatprep.subr.bf16.mxu0 0
        %972 = vmatpush1.bf16.xpose.msra.mxu0 0
        %973 = vmatprep.subr.bf16.mxu0 0
        %974 = vmatpush1.bf16.xpose.msra.mxu0 0
        %975 = vmatprep.subr.bf16.mxu0 0
        %976 = vmatpush1.bf16.xpose.msra.mxu0 0
        %977 = vmatprep.subr.bf16.mxu0 0
        %978 = vmatpush1.bf16.xpose.msra.mxu0 0
        %979 = vmatprep.subr.bf16.mxu0 0
        %980 = vmatpush1.bf16.xpose.msra.mxu0 0
        %981 = vmatprep.subr.bf16.mxu0 0
        %982 = vmatpush1.bf16.xpose.msra.mxu0 0
        %983 = vmatprep.subr.bf16.mxu0 0
        %984 = vmatpush1.bf16.xpose.msra.mxu0 0
        %985 = vmatprep.subr.bf16.mxu0 0
        %986 = vmatpush1.bf16.xpose.msra.mxu0 0
        %987 = vmatprep.subr.bf16.mxu0 0
        %988 = vmatpush1.bf16.xpose.msra.mxu0 0
        %989 = vmatprep.subr.bf16.mxu0 0
        %990 = vmatpush1.bf16.xpose.msra.mxu0 0
        %991 = vmatprep.subr.bf16.mxu0 0
        %992 = vmatpush1.bf16.xpose.msra.mxu0 0
        %993 = vmatprep.subr.bf16.mxu0 0
        %994 = vmatpush1.bf16.xpose.msra.mxu0 0
        %995 = vmatprep.mubr.bf16.mxu0 0
        %996 = vmatmul.mubr.bf16.gmra.mrb[0].mxu0 %v958
        %v997 = vpop.f32.mrb[0].mxu0
        %v998 = vadd.f32 0.0, %v997
        %v999 = vpop.f32.mrb[0].mxu0
        %v1000 = vpop.f32.mrb[0].mxu0
        %v1001 = vadd.f32 0.0, %v1000
        %v1002 = vpop.f32.mrb[0].mxu0
        %1003 = vdwg.mxu0
        %vm1004 = vcmask 130048
        %v1005 = vsel %vm1004, %v998, -inf
        %1006 = vmax.xlane.f32.xlu0 %v1005
        %v1007 = vpop.xlane.xlu0 %1006
        %v1008 = vsel %vm1004, %v1001, -inf
        %1009 = vmax.xlane.f32.xlu0 %v1008
        %v1010 = vpop.xlane.xlu0 %1009
        %v1011 = vsub.f32 %v998, %v1007
        %v1012 = vsub.f32 %v1001, %v1010
        %v1013 = vmul.f32 %v1011, 1.442695
        %v1014 = vpow.pop %v1013
        %v1015 = vmul.f32 %v1012, 1.442695
        %v1016 = vpow.pop %v1015
        %v1017 = vsel %vm1004, %v1014, 0.0
        %1018 = vadd.xlane.f32.xlu0 %v1017
        %v1019 = vpop.xlane.xlu0 %1018
        %v1020 = vsel %vm1004, %v1016, 0.0
        %1021 = vadd.xlane.f32.xlu0 %v1020
        %v1022 = vpop.xlane.xlu0 %1021
        %v1023 = vrcp.pop %v1019
        %v1024 = vrcp.pop %v1022
        %v1025 = vmul.f32 %v1014, %v1023
        %v1026 = vmul.f32 %v1016, %v1024
        %v1027 = vpack.c.bf16 %v1026, %v1025
        %v1029 = vsel %vm1004, %v1027, 0
        %1031 = vmatprep.subr.bf16.mxu0 0
        %1032 = vmatpush1.bf16.msra.mxu0 %v955
        %1033 = vmatprep.subr.bf16.mxu0 0
        %1034 = vmatpush1.bf16.msra.mxu0 0
        %1035 = vmatprep.subr.bf16.mxu0 0
        %1036 = vmatpush1.bf16.msra.mxu0 0
        %1037 = vmatprep.subr.bf16.mxu0 0
        %1038 = vmatpush1.bf16.msra.mxu0 0
        %1039 = vmatprep.subr.bf16.mxu0 0
        %1040 = vmatpush1.bf16.msra.mxu0 0
        %1041 = vmatprep.subr.bf16.mxu0 0
        %1042 = vmatpush1.bf16.msra.mxu0 0
        %1043 = vmatprep.subr.bf16.mxu0 0
        %1044 = vmatpush1.bf16.msra.mxu0 0
        %1045 = vmatprep.subr.bf16.mxu0 0
        %1046 = vmatpush1.bf16.msra.mxu0 0
        %1047 = vmatprep.subr.bf16.mxu0 0
        %1048 = vmatpush1.bf16.msra.mxu0 0
        %1049 = vmatprep.subr.bf16.mxu0 0
        %1050 = vmatpush1.bf16.msra.mxu0 0
        %1051 = vmatprep.subr.bf16.mxu0 0
        %1052 = vmatpush1.bf16.msra.mxu0 0
        %1053 = vmatprep.subr.bf16.mxu0 0
        %1054 = vmatpush1.bf16.msra.mxu0 0
        %1055 = vmatprep.subr.bf16.mxu0 0
        %1056 = vmatpush1.bf16.msra.mxu0 0
        %1057 = vmatprep.subr.bf16.mxu0 0
        %1058 = vmatpush1.bf16.msra.mxu0 0
        %1059 = vmatprep.subr.bf16.mxu0 0
        %1060 = vmatpush1.bf16.msra.mxu0 0
        %1061 = vmatprep.subr.bf16.mxu0 0
        %1062 = vmatpush1.bf16.msra.mxu0 0
        %1063 = vmatprep.mubr.bf16.mxu0 0
        %1064 = vmatmul.mubr.bf16.gmra.mrb[0].mxu0 %v1029
        %v1065 = vpop.f32.mrb[0].mxu0
        %v1066 = vadd.f32 0.0, %v1065
        %v1067 = vpop.f32.mrb[0].mxu0
        %v1068 = vpop.f32.mrb[0].mxu0
        %v1069 = vadd.f32 0.0, %v1068
        %v1070 = vpop.f32.mrb[0].mxu0
        %1071 = vdwg.mxu0
        %v1072 = vpack.c.bf16 %v1069, %v1066
        %s1073 = smul.addr %s837, 4
        %s1074 = scalar_lea.vmem [#allocation11], %s1073
        %v1075 = vld [vmem:[%s1074] sm:$0xf]
        %v1076 = vld [vmem:[%s1074 + $0x4] sm:$0xf]
        %v1077 = vld [vmem:[%s1074 + $0x8] sm:$0xf]
        %v1078 = vld [vmem:[%s1074 + $0xc] sm:$0xf]
        %1080 = vrot.lane.b32.xlu0 %v953, 96
        %v1081 = vpop.permute.xlu0 %1080
        %1083 = vrot.lane.b32.xlu0 %v954, 96
        %v1084 = vpop.permute.xlu0 %1083
        %v1086 = vsel %vm956, %v1081, 0
        %v1089 = vsel %vm956, %v1084, 0
        %1091 = vmatprep.subr.bf16.mxu0 0
        %1092 = vmatpush1.bf16.xpose.msra.mxu0 %v1089
        %1093 = vmatprep.subr.bf16.mxu0 0
        %1094 = vmatpush1.bf16.xpose.msra.mxu0 0
        %1095 = vmatprep.subr.bf16.mxu0 0
        %1096 = vmatpush1.bf16.xpose.msra.mxu0 0
        %1097 = vmatprep.subr.bf16.mxu0 0
        %1098 = vmatpush1.bf16.xpose.msra.mxu0 0
        %1099 = vmatprep.subr.bf16.mxu0 0
        %1100 = vmatpush1.bf16.xpose.msra.mxu0 0
        %1101 = vmatprep.subr.bf16.mxu0 0
        %1102 = vmatpush1.bf16.xpose.msra.mxu0 0
        %1103 = vmatprep.subr.bf16.mxu0 0
        %1104 = vmatpush1.bf16.xpose.msra.mxu0 0
        %1105 = vmatprep.subr.bf16.mxu0 0
        %1106 = vmatpush1.bf16.xpose.msra.mxu0 0
        %1107 = vmatprep.subr.bf16.mxu0 0
        %1108 = vmatpush1.bf16.xpose.msra.mxu0 0
        %1109 = vmatprep.subr.bf16.mxu0 0
        %1110 = vmatpush1.bf16.xpose.msra.mxu0 0
        %1111 = vmatprep.subr.bf16.mxu0 0
        %1112 = vmatpush1.bf16.xpose.msra.mxu0 0
        %1113 = vmatprep.subr.bf16.mxu0 0
        %1114 = vmatpush1.bf16.xpose.msra.mxu0 0
        %1115 = vmatprep.subr.bf16.mxu0 0
        %1116 = vmatpush1.bf16.xpose.msra.mxu0 0
        %1117 = vmatprep.subr.bf16.mxu0 0
        %1118 = vmatpush1.bf16.xpose.msra.mxu0 0
        %1119 = vmatprep.subr.bf16.mxu0 0
        %1120 = vmatpush1.bf16.xpose.msra.mxu0 0
        %1121 = vmatprep.subr.bf16.mxu0 0
        %1122 = vmatpush1.bf16.xpose.msra.mxu0 0
        %1123 = vmatprep.mubr.bf16.mxu0 0
        %1124 = vmatmul.mubr.bf16.gmra.mrb[0].mxu0 %v1086
        %v1125 = vpop.f32.mrb[0].mxu0
        %v1126 = vadd.f32 0.0, %v1125
        %v1127 = vpop.f32.mrb[0].mxu0
        %v1128 = vpop.f32.mrb[0].mxu0
        %v1129 = vadd.f32 0.0, %v1128
        %v1130 = vpop.f32.mrb[0].mxu0
        %1131 = vdwg.mxu0
        %v1132 = vsel %vm1004, %v1126, -inf
        %1133 = vmax.xlane.f32.xlu0 %v1132
        %v1134 = vpop.xlane.xlu0 %1133
        %v1135 = vsel %vm1004, %v1129, -inf
        %1136 = vmax.xlane.f32.xlu0 %v1135
        %v1137 = vpop.xlane.xlu0 %1136
        %v1138 = vsub.f32 %v1126, %v1134
        %v1139 = vsub.f32 %v1129, %v1137
        %v1140 = vmul.f32 %v1138, 1.442695
        %v1141 = vpow.pop %v1140
        %v1142 = vmul.f32 %v1139, 1.442695
        %v1143 = vpow.pop %v1142
        %v1144 = vsel %vm1004, %v1141, 0.0
        %1145 = vadd.xlane.f32.xlu0 %v1144
        %v1146 = vpop.xlane.xlu0 %1145
        %v1147 = vsel %vm1004, %v1143, 0.0
        %1148 = vadd.xlane.f32.xlu0 %v1147
        %v1149 = vpop.xlane.xlu0 %1148
        %v1150 = vrcp.pop %v1146
        %v1151 = vrcp.pop %v1149
        %v1152 = vmul.f32 %v1141, %v1150
        %v1153 = vmul.f32 %v1143, %v1151
        %v1154 = vpack.c.bf16 %v1153, %v1152
        %1156 = vrot.lane.b32.xlu0 %v955, 96
        %v1157 = vpop.permute.xlu0 %1156
        %v1160 = vsel %vm1004, %v1154, 0
        %1162 = vmatprep.subr.bf16.mxu0 0
        %1163 = vmatpush1.bf16.msra.mxu0 %v1157
        %1164 = vmatprep.subr.bf16.mxu0 0
        %1165 = vmatpush1.bf16.msra.mxu0 0
        %1166 = vmatprep.subr.bf16.mxu0 0
        %1167 = vmatpush1.bf16.msra.mxu0 0
        %1168 = vmatprep.subr.bf16.mxu0 0
        %1169 = vmatpush1.bf16.msra.mxu0 0
        %1170 = vmatprep.subr.bf16.mxu0 0
        %1171 = vmatpush1.bf16.msra.mxu0 0
        %1172 = vmatprep.subr.bf16.mxu0 0
        %1173 = vmatpush1.bf16.msra.mxu0 0
        %1174 = vmatprep.subr.bf16.mxu0 0
        %1175 = vmatpush1.bf16.msra.mxu0 0
        %1176 = vmatprep.subr.bf16.mxu0 0
        %1177 = vmatpush1.bf16.msra.mxu0 0
        %1178 = vmatprep.subr.bf16.mxu0 0
        %1179 = vmatpush1.bf16.msra.mxu0 0
        %1180 = vmatprep.subr.bf16.mxu0 0
        %1181 = vmatpush1.bf16.msra.mxu0 0
        %1182 = vmatprep.subr.bf16.mxu0 0
        %1183 = vmatpush1.bf16.msra.mxu0 0
        %1184 = vmatprep.subr.bf16.mxu0 0
        %1185 = vmatpush1.bf16.msra.mxu0 0
        %1186 = vmatprep.subr.bf16.mxu0 0
        %1187 = vmatpush1.bf16.msra.mxu0 0
        %1188 = vmatprep.subr.bf16.mxu0 0
        %1189 = vmatpush1.bf16.msra.mxu0 0
        %1190 = vmatprep.subr.bf16.mxu0 0
        %1191 = vmatpush1.bf16.msra.mxu0 0
        %1192 = vmatprep.subr.bf16.mxu0 0
        %1193 = vmatpush1.bf16.msra.mxu0 0
        %1194 = vmatprep.mubr.bf16.mxu0 0
        %1195 = vmatmul.mubr.bf16.gmra.mrb[0].mxu0 %v1160
        %v1196 = vpop.f32.mrb[0].mxu0
        %v1197 = vadd.f32 0.0, %v1196
        %v1198 = vpop.f32.mrb[0].mxu0
        %v1199 = vpop.f32.mrb[0].mxu0
        %v1200 = vadd.f32 0.0, %v1199
        %v1201 = vpop.f32.mrb[0].mxu0
        %1202 = vdwg.mxu0
        %v1203 = vpack.c.bf16 %v1200, %v1197
        %s1204 = sadd.s32 4, %s837
        %s1205 = smul.addr %s1204, 4
        %s1206 = scalar_lea.vmem [#allocation11], %s1205
        %v1207 = vld [vmem:[%s1206] sm:$0xf]
        %v1208 = vld [vmem:[%s1206 + $0x4] sm:$0xf]
        %v1209 = vld [vmem:[%s1206 + $0x8] sm:$0xf]
        %v1210 = vld [vmem:[%s1206 + $0xc] sm:$0xf]
        %v1215 = vunpack.c.l.b16 %v1207
        %v1216 = vunpack.c.l.b16 %v1208
        %v1217 = vunpack.c.l.b16 %v1209
        %v1218 = vunpack.c.l.b16 %v1210
        %v1219 = vpack.c.b16 %v1216, %v1215
        %v1220 = vpack.c.b16 %v1218, %v1217
        %v1224 = vsel %vm956, %v1203, 0
        %1226 = vmatprep.subr.bf16.mxu0 0
        %1227 = vmatpush1.bf16.msra.mxu0 %v1219
        %1228 = vmatprep.subr.bf16.mxu0 0
        %1229 = vmatpush1.bf16.msra.mxu0 %v1220
        %1230 = vmatprep.subr.bf16.mxu0 0
        %1231 = vmatpush1.bf16.msra.mxu0 0
        %1232 = vmatprep.subr.bf16.mxu0 0
        %1233 = vmatpush1.bf16.msra.mxu0 0
        %1234 = vmatprep.subr.bf16.mxu0 0
        %1235 = vmatpush1.bf16.msra.mxu0 0
        %1236 = vmatprep.subr.bf16.mxu0 0
        %1237 = vmatpush1.bf16.msra.mxu0 0
        %1238 = vmatprep.subr.bf16.mxu0 0
        %1239 = vmatpush1.bf16.msra.mxu0 0
        %1240 = vmatprep.subr.bf16.mxu0 0
        %1241 = vmatpush1.bf16.msra.mxu0 0
        %1242 = vmatprep.subr.bf16.mxu0 0
        %1243 = vmatpush1.bf16.msra.mxu0 0
        %1244 = vmatprep.subr.bf16.mxu0 0
        %1245 = vmatpush1.bf16.msra.mxu0 0
        %1246 = vmatprep.subr.bf16.mxu0 0
        %1247 = vmatpush1.bf16.msra.mxu0 0
        %1248 = vmatprep.subr.bf16.mxu0 0
        %1249 = vmatpush1.bf16.msra.mxu0 0
        %1250 = vmatprep.subr.bf16.mxu0 0
        %1251 = vmatpush1.bf16.msra.mxu0 0
        %1252 = vmatprep.subr.bf16.mxu0 0
        %1253 = vmatpush1.bf16.msra.mxu0 0
        %1254 = vmatprep.subr.bf16.mxu0 0
        %1255 = vmatpush1.bf16.msra.mxu0 0
        %1256 = vmatprep.subr.bf16.mxu0 0
        %1257 = vmatpush1.bf16.msra.mxu0 0
        %1258 = vmatprep.mubr.bf16.mxu0 0
        %1259 = vmatmul.mubr.bf16.gmra.mrb[0].mxu0 %v1224
        %v1260 = vpop.f32.mrb[0].mxu0
        %v1261 = vadd.f32 0.0, %v1260
        %v1262 = vpop.f32.mrb[0].mxu0
        %v1263 = vpop.f32.mrb[0].mxu0
        %v1264 = vadd.f32 0.0, %v1263
        %v1265 = vpop.f32.mrb[0].mxu0
        %1266 = vdwg.mxu0
        %v1271 = vunpack.c.l.b16 %v1075
        %v1272 = vunpack.c.l.b16 %v1076
        %v1273 = vunpack.c.l.b16 %v1077
        %v1274 = vunpack.c.l.b16 %v1078
        %v1275 = vpack.c.b16 %v1272, %v1271
        %v1276 = vpack.c.b16 %v1274, %v1273
        %v1280 = vsel %vm956, %v1072, 0
        %1282 = vmatprep.subr.bf16.mxu0 0
        %1283 = vmatpush1.bf16.msra.mxu0 %v1275
        %1284 = vmatprep.subr.bf16.mxu0 0
        %1285 = vmatpush1.bf16.msra.mxu0 %v1276
        %1286 = vmatprep.subr.bf16.mxu0 0
        %1287 = vmatpush1.bf16.msra.mxu0 0
        %1288 = vmatprep.subr.bf16.mxu0 0
        %1289 = vmatpush1.bf16.msra.mxu0 0
        %1290 = vmatprep.subr.bf16.mxu0 0
        %1291 = vmatpush1.bf16.msra.mxu0 0
        %1292 = vmatprep.subr.bf16.mxu0 0
        %1293 = vmatpush1.bf16.msra.mxu0 0
        %1294 = vmatprep.subr.bf16.mxu0 0
        %1295 = vmatpush1.bf16.msra.mxu0 0
        %1296 = vmatprep.subr.bf16.mxu0 0
        %1297 = vmatpush1.bf16.msra.mxu0 0
        %1298 = vmatprep.subr.bf16.mxu0 0
        %1299 = vmatpush1.bf16.msra.mxu0 0
        %1300 = vmatprep.subr.bf16.mxu0 0
        %1301 = vmatpush1.bf16.msra.mxu0 0
        %1302 = vmatprep.subr.bf16.mxu0 0
        %1303 = vmatpush1.bf16.msra.mxu0 0
        %1304 = vmatprep.subr.bf16.mxu0 0
        %1305 = vmatpush1.bf16.msra.mxu0 0
        %1306 = vmatprep.subr.bf16.mxu0 0
        %1307 = vmatpush1.bf16.msra.mxu0 0
        %1308 = vmatprep.subr.bf16.mxu0 0
        %1309 = vmatpush1.bf16.msra.mxu0 0
        %1310 = vmatprep.subr.bf16.mxu0 0
        %1311 = vmatpush1.bf16.msra.mxu0 0
        %1312 = vmatprep.subr.bf16.mxu0 0
        %1313 = vmatpush1.bf16.msra.mxu0 0
        %1314 = vmatprep.mubr.bf16.mxu0 0
        %1315 = vmatmul.mubr.bf16.gmra.mrb[0].mxu0 %v1280
        %v1316 = vpop.f32.mrb[0].mxu0
        %v1317 = vadd.f32 %v1261, %v1316
        %v1318 = vpop.f32.mrb[0].mxu0
        %v1319 = vpop.f32.mrb[0].mxu0
        %v1320 = vadd.f32 %v1264, %v1319
        %v1321 = vpop.f32.mrb[0].mxu0
        %1322 = vdwg.mxu0
        %1323 = vrot.lane.b32.xlu0 %v953, 64
        %v1324 = vpop.permute.xlu0 %1323
        %1325 = vrot.lane.b32.xlu0 %v954, 64
        %v1326 = vpop.permute.xlu0 %1325
        %v1328 = vsel %vm956, %v1324, 0
        %v1331 = vsel %vm956, %v1326, 0
        %1333 = vmatprep.subr.bf16.mxu0 0
        %1334 = vmatpush1.bf16.xpose.msra.mxu0 %v1331
        %1335 = vmatprep.subr.bf16.mxu0 0
        %1336 = vmatpush1.bf16.xpose.msra.mxu0 0
        %1337 = vmatprep.subr.bf16.mxu0 0
        %1338 = vmatpush1.bf16.xpose.msra.mxu0 0
        %1339 = vmatprep.subr.bf16.mxu0 0
        %1340 = vmatpush1.bf16.xpose.msra.mxu0 0
        %1341 = vmatprep.subr.bf16.mxu0 0
        %1342 = vmatpush1.bf16.xpose.msra.mxu0 0
        %1343 = vmatprep.subr.bf16.mxu0 0
        %1344 = vmatpush1.bf16.xpose.msra.mxu0 0
        %1345 = vmatprep.subr.bf16.mxu0 0
        %1346 = vmatpush1.bf16.xpose.msra.mxu0 0
        %1347 = vmatprep.subr.bf16.mxu0 0
        %1348 = vmatpush1.bf16.xpose.msra.mxu0 0
        %1349 = vmatprep.subr.bf16.mxu0 0
        %1350 = vmatpush1.bf16.xpose.msra.mxu0 0
        %1351 = vmatprep.subr.bf16.mxu0 0
        %1352 = vmatpush1.bf16.xpose.msra.mxu0 0
        %1353 = vmatprep.subr.bf16.mxu0 0
        %1354 = vmatpush1.bf16.xpose.msra.mxu0 0
        %1355 = vmatprep.subr.bf16.mxu0 0
        %1356 = vmatpush1.bf16.xpose.msra.mxu0 0
        %1357 = vmatprep.subr.bf16.mxu0 0
        %1358 = vmatpush1.bf16.xpose.msra.mxu0 0
        %1359 = vmatprep.subr.bf16.mxu0 0
        %1360 = vmatpush1.bf16.xpose.msra.mxu0 0
        %1361 = vmatprep.subr.bf16.mxu0 0
        %1362 = vmatpush1.bf16.xpose.msra.mxu0 0
        %1363 = vmatprep.subr.bf16.mxu0 0
        %1364 = vmatpush1.bf16.xpose.msra.mxu0 0
        %1365 = vmatprep.mubr.bf16.mxu0 0
        %1366 = vmatmul.mubr.bf16.gmra.mrb[0].mxu0 %v1328
        %v1367 = vpop.f32.mrb[0].mxu0
        %v1368 = vadd.f32 0.0, %v1367
        %v1369 = vpop.f32.mrb[0].mxu0
        %v1370 = vpop.f32.mrb[0].mxu0
        %v1371 = vadd.f32 0.0, %v1370
        %v1372 = vpop.f32.mrb[0].mxu0
        %1373 = vdwg.mxu0
        %v1374 = vsel %vm1004, %v1368, -inf
        %1375 = vmax.xlane.f32.xlu0 %v1374
        %v1376 = vpop.xlane.xlu0 %1375
        %v1377 = vsel %vm1004, %v1371, -inf
        %1378 = vmax.xlane.f32.xlu0 %v1377
        %v1379 = vpop.xlane.xlu0 %1378
        %v1380 = vsub.f32 %v1368, %v1376
        %v1381 = vsub.f32 %v1371, %v1379
        %v1382 = vmul.f32 %v1380, 1.442695
        %v1383 = vpow.pop %v1382
        %v1384 = vmul.f32 %v1381, 1.442695
        %v1385 = vpow.pop %v1384
        %v1386 = vsel %vm1004, %v1383, 0.0
        %1387 = vadd.xlane.f32.xlu0 %v1386
        %v1388 = vpop.xlane.xlu0 %1387
        %v1389 = vsel %vm1004, %v1385, 0.0
        %1390 = vadd.xlane.f32.xlu0 %v1389
        %v1391 = vpop.xlane.xlu0 %1390
        %v1392 = vrcp.pop %v1388
        %v1393 = vrcp.pop %v1391
        %v1394 = vmul.f32 %v1383, %v1392
        %v1395 = vmul.f32 %v1385, %v1393
        %v1396 = vpack.c.bf16 %v1395, %v1394
        %1397 = vrot.lane.b32.xlu0 %v955, 64
        %v1398 = vpop.permute.xlu0 %1397
        %v1401 = vsel %vm1004, %v1396, 0
        %1403 = vmatprep.subr.bf16.mxu0 0
        %1404 = vmatpush1.bf16.msra.mxu0 %v1398
        %1405 = vmatprep.subr.bf16.mxu0 0
        %1406 = vmatpush1.bf16.msra.mxu0 0
        %1407 = vmatprep.subr.bf16.mxu0 0
        %1408 = vmatpush1.bf16.msra.mxu0 0
        %1409 = vmatprep.subr.bf16.mxu0 0
        %1410 = vmatpush1.bf16.msra.mxu0 0
        %1411 = vmatprep.subr.bf16.mxu0 0
        %1412 = vmatpush1.bf16.msra.mxu0 0
        %1413 = vmatprep.subr.bf16.mxu0 0
        %1414 = vmatpush1.bf16.msra.mxu0 0
        %1415 = vmatprep.subr.bf16.mxu0 0
        %1416 = vmatpush1.bf16.msra.mxu0 0
        %1417 = vmatprep.subr.bf16.mxu0 0
        %1418 = vmatpush1.bf16.msra.mxu0 0
        %1419 = vmatprep.subr.bf16.mxu0 0
        %1420 = vmatpush1.bf16.msra.mxu0 0
        %1421 = vmatprep.subr.bf16.mxu0 0
        %1422 = vmatpush1.bf16.msra.mxu0 0
        %1423 = vmatprep.subr.bf16.mxu0 0
        %1424 = vmatpush1.bf16.msra.mxu0 0
        %1425 = vmatprep.subr.bf16.mxu0 0
        %1426 = vmatpush1.bf16.msra.mxu0 0
        %1427 = vmatprep.subr.bf16.mxu0 0
        %1428 = vmatpush1.bf16.msra.mxu0 0
        %1429 = vmatprep.subr.bf16.mxu0 0
        %1430 = vmatpush1.bf16.msra.mxu0 0
        %1431 = vmatprep.subr.bf16.mxu0 0
        %1432 = vmatpush1.bf16.msra.mxu0 0
        %1433 = vmatprep.subr.bf16.mxu0 0
        %1434 = vmatpush1.bf16.msra.mxu0 0
        %1435 = vmatprep.mubr.bf16.mxu0 0
        %1436 = vmatmul.mubr.bf16.gmra.mrb[0].mxu0 %v1401
        %v1437 = vpop.f32.mrb[0].mxu0
        %v1438 = vadd.f32 0.0, %v1437
        %v1439 = vpop.f32.mrb[0].mxu0
        %v1440 = vpop.f32.mrb[0].mxu0
        %v1441 = vadd.f32 0.0, %v1440
        %v1442 = vpop.f32.mrb[0].mxu0
        %1443 = vdwg.mxu0
        %v1444 = vpack.c.bf16 %v1441, %v1438
        %s1445 = sadd.s32 8, %s837
        %s1446 = smul.addr %s1445, 4
        %s1447 = scalar_lea.vmem [#allocation11], %s1446
        %v1448 = vld [vmem:[%s1447] sm:$0xf]
        %v1449 = vld [vmem:[%s1447 + $0x4] sm:$0xf]
        %v1450 = vld [vmem:[%s1447 + $0x8] sm:$0xf]
        %v1451 = vld [vmem:[%s1447 + $0xc] sm:$0xf]
        %v1456 = vunpack.c.l.b16 %v1448
        %v1457 = vunpack.c.l.b16 %v1449
        %v1458 = vunpack.c.l.b16 %v1450
        %v1459 = vunpack.c.l.b16 %v1451
        %v1460 = vpack.c.b16 %v1457, %v1456
        %v1461 = vpack.c.b16 %v1459, %v1458
        %v1465 = vsel %vm956, %v1444, 0
        %1467 = vmatprep.subr.bf16.mxu0 0
        %1468 = vmatpush1.bf16.msra.mxu0 %v1460
        %1469 = vmatprep.subr.bf16.mxu0 0
        %1470 = vmatpush1.bf16.msra.mxu0 %v1461
        %1471 = vmatprep.subr.bf16.mxu0 0
        %1472 = vmatpush1.bf16.msra.mxu0 0
        %1473 = vmatprep.subr.bf16.mxu0 0
        %1474 = vmatpush1.bf16.msra.mxu0 0
        %1475 = vmatprep.subr.bf16.mxu0 0
        %1476 = vmatpush1.bf16.msra.mxu0 0
        %1477 = vmatprep.subr.bf16.mxu0 0
        %1478 = vmatpush1.bf16.msra.mxu0 0
        %1479 = vmatprep.subr.bf16.mxu0 0
        %1480 = vmatpush1.bf16.msra.mxu0 0
        %1481 = vmatprep.subr.bf16.mxu0 0
        %1482 = vmatpush1.bf16.msra.mxu0 0
        %1483 = vmatprep.subr.bf16.mxu0 0
        %1484 = vmatpush1.bf16.msra.mxu0 0
        %1485 = vmatprep.subr.bf16.mxu0 0
        %1486 = vmatpush1.bf16.msra.mxu0 0
        %1487 = vmatprep.subr.bf16.mxu0 0
        %1488 = vmatpush1.bf16.msra.mxu0 0
        %1489 = vmatprep.subr.bf16.mxu0 0
        %1490 = vmatpush1.bf16.msra.mxu0 0
        %1491 = vmatprep.subr.bf16.mxu0 0
        %1492 = vmatpush1.bf16.msra.mxu0 0
        %1493 = vmatprep.subr.bf16.mxu0 0
        %1494 = vmatpush1.bf16.msra.mxu0 0
        %1495 = vmatprep.subr.bf16.mxu0 0
        %1496 = vmatpush1.bf16.msra.mxu0 0
        %1497 = vmatprep.subr.bf16.mxu0 0
        %1498 = vmatpush1.bf16.msra.mxu0 0
        %1499 = vmatprep.mubr.bf16.mxu0 0
        %1500 = vmatmul.mubr.bf16.gmra.mrb[0].mxu0 %v1465
        %v1501 = vpop.f32.mrb[0].mxu0
        %v1502 = vadd.f32 0.0, %v1501
        %v1503 = vpop.f32.mrb[0].mxu0
        %v1504 = vpop.f32.mrb[0].mxu0
        %v1505 = vadd.f32 0.0, %v1504
        %v1506 = vpop.f32.mrb[0].mxu0
        %1507 = vdwg.mxu0
        %v1508 = vadd.f32 %v1317, %v1502
        %v1509 = vadd.f32 %v1320, %v1505
        %1510 = vrot.lane.b32.xlu0 %v953, 32
        %v1511 = vpop.permute.xlu0 %1510
        %1512 = vrot.lane.b32.xlu0 %v954, 32
        %v1513 = vpop.permute.xlu0 %1512
        %v1515 = vsel %vm956, %v1511, 0
        %v1518 = vsel %vm956, %v1513, 0
        %1520 = vmatprep.subr.bf16.mxu0 0
        %1521 = vmatpush1.bf16.xpose.msra.mxu0 %v1518
        %1522 = vmatprep.subr.bf16.mxu0 0
        %1523 = vmatpush1.bf16.xpose.msra.mxu0 0
        %1524 = vmatprep.subr.bf16.mxu0 0
        %1525 = vmatpush1.bf16.xpose.msra.mxu0 0
        %1526 = vmatprep.subr.bf16.mxu0 0
        %1527 = vmatpush1.bf16.xpose.msra.mxu0 0
        %1528 = vmatprep.subr.bf16.mxu0 0
        %1529 = vmatpush1.bf16.xpose.msra.mxu0 0
        %1530 = vmatprep.subr.bf16.mxu0 0
        %1531 = vmatpush1.bf16.xpose.msra.mxu0 0
        %1532 = vmatprep.subr.bf16.mxu0 0
        %1533 = vmatpush1.bf16.xpose.msra.mxu0 0
        %1534 = vmatprep.subr.bf16.mxu0 0
        %1535 = vmatpush1.bf16.xpose.msra.mxu0 0
        %1536 = vmatprep.subr.bf16.mxu0 0
        %1537 = vmatpush1.bf16.xpose.msra.mxu0 0
        %1538 = vmatprep.subr.bf16.mxu0 0
        %1539 = vmatpush1.bf16.xpose.msra.mxu0 0
        %1540 = vmatprep.subr.bf16.mxu0 0
        %1541 = vmatpush1.bf16.xpose.msra.mxu0 0
        %1542 = vmatprep.subr.bf16.mxu0 0
        %1543 = vmatpush1.bf16.xpose.msra.mxu0 0
        %1544 = vmatprep.subr.bf16.mxu0 0
        %1545 = vmatpush1.bf16.xpose.msra.mxu0 0
        %1546 = vmatprep.subr.bf16.mxu0 0
        %1547 = vmatpush1.bf16.xpose.msra.mxu0 0
        %1548 = vmatprep.subr.bf16.mxu0 0
        %1549 = vmatpush1.bf16.xpose.msra.mxu0 0
        %1550 = vmatprep.subr.bf16.mxu0 0
        %1551 = vmatpush1.bf16.xpose.msra.mxu0 0
        %1552 = vmatprep.mubr.bf16.mxu0 0
        %1553 = vmatmul.mubr.bf16.gmra.mrb[0].mxu0 %v1515
        %v1554 = vpop.f32.mrb[0].mxu0
        %v1555 = vadd.f32 0.0, %v1554
        %v1556 = vpop.f32.mrb[0].mxu0
        %v1557 = vpop.f32.mrb[0].mxu0
        %v1558 = vadd.f32 0.0, %v1557
        %v1559 = vpop.f32.mrb[0].mxu0
        %1560 = vdwg.mxu0
        %v1561 = vsel %vm1004, %v1555, -inf
        %1562 = vmax.xlane.f32.xlu0 %v1561
        %v1563 = vpop.xlane.xlu0 %1562
        %v1564 = vsel %vm1004, %v1558, -inf
        %1565 = vmax.xlane.f32.xlu0 %v1564
        %v1566 = vpop.xlane.xlu0 %1565
        %v1567 = vsub.f32 %v1555, %v1563
        %v1568 = vsub.f32 %v1558, %v1566
        %v1569 = vmul.f32 %v1567, 1.442695
        %v1570 = vpow.pop %v1569
        %v1571 = vmul.f32 %v1568, 1.442695
        %v1572 = vpow.pop %v1571
        %v1573 = vsel %vm1004, %v1570, 0.0
        %1574 = vadd.xlane.f32.xlu0 %v1573
        %v1575 = vpop.xlane.xlu0 %1574
        %v1576 = vsel %vm1004, %v1572, 0.0
        %1577 = vadd.xlane.f32.xlu0 %v1576
        %v1578 = vpop.xlane.xlu0 %1577
        %v1579 = vrcp.pop %v1575
        %v1580 = vrcp.pop %v1578
        %v1581 = vmul.f32 %v1570, %v1579
        %v1582 = vmul.f32 %v1572, %v1580
        %v1583 = vpack.c.bf16 %v1582, %v1581
        %1584 = vrot.lane.b32.xlu0 %v955, 32
        %v1585 = vpop.permute.xlu0 %1584
        %v1588 = vsel %vm1004, %v1583, 0
        %1590 = vmatprep.subr.bf16.mxu0 0
        %1591 = vmatpush1.bf16.msra.mxu0 %v1585
        %1592 = vmatprep.subr.bf16.mxu0 0
        %1593 = vmatpush1.bf16.msra.mxu0 0
        %1594 = vmatprep.subr.bf16.mxu0 0
        %1595 = vmatpush1.bf16.msra.mxu0 0
        %1596 = vmatprep.subr.bf16.mxu0 0
        %1597 = vmatpush1.bf16.msra.mxu0 0
        %1598 = vmatprep.subr.bf16.mxu0 0
        %1599 = vmatpush1.bf16.msra.mxu0 0
        %1600 = vmatprep.subr.bf16.mxu0 0
        %1601 = vmatpush1.bf16.msra.mxu0 0
        %1602 = vmatprep.subr.bf16.mxu0 0
        %1603 = vmatpush1.bf16.msra.mxu0 0
        %1604 = vmatprep.subr.bf16.mxu0 0
        %1605 = vmatpush1.bf16.msra.mxu0 0
        %1606 = vmatprep.subr.bf16.mxu0 0
        %1607 = vmatpush1.bf16.msra.mxu0 0
        %1608 = vmatprep.subr.bf16.mxu0 0
        %1609 = vmatpush1.bf16.msra.mxu0 0
        %1610 = vmatprep.subr.bf16.mxu0 0
        %1611 = vmatpush1.bf16.msra.mxu0 0
        %1612 = vmatprep.subr.bf16.mxu0 0
        %1613 = vmatpush1.bf16.msra.mxu0 0
        %1614 = vmatprep.subr.bf16.mxu0 0
        %1615 = vmatpush1.bf16.msra.mxu0 0
        %1616 = vmatprep.subr.bf16.mxu0 0
        %1617 = vmatpush1.bf16.msra.mxu0 0
        %1618 = vmatprep.subr.bf16.mxu0 0
        %1619 = vmatpush1.bf16.msra.mxu0 0
        %1620 = vmatprep.subr.bf16.mxu0 0
        %1621 = vmatpush1.bf16.msra.mxu0 0
        %1622 = vmatprep.mubr.bf16.mxu0 0
        %1623 = vmatmul.mubr.bf16.gmra.mrb[0].mxu0 %v1588
        %v1624 = vpop.f32.mrb[0].mxu0
        %v1625 = vadd.f32 0.0, %v1624
        %v1626 = vpop.f32.mrb[0].mxu0
        %v1627 = vpop.f32.mrb[0].mxu0
        %v1628 = vadd.f32 0.0, %v1627
        %v1629 = vpop.f32.mrb[0].mxu0
        %1630 = vdwg.mxu0
        %v1631 = vpack.c.bf16 %v1628, %v1625
        %s1632 = sadd.s32 12, %s837
        %s1633 = smul.addr %s1632, 4
        %s1634 = scalar_lea.vmem [#allocation11], %s1633
        %v1635 = vld [vmem:[%s1634] sm:$0xf]
        %v1636 = vld [vmem:[%s1634 + $0x4] sm:$0xf]
        %v1637 = vld [vmem:[%s1634 + $0x8] sm:$0xf]
        %v1638 = vld [vmem:[%s1634 + $0xc] sm:$0xf]
        %v1643 = vunpack.c.l.b16 %v1635
        %v1644 = vunpack.c.l.b16 %v1636
        %v1645 = vunpack.c.l.b16 %v1637
        %v1646 = vunpack.c.l.b16 %v1638
        %v1647 = vpack.c.b16 %v1644, %v1643
        %v1648 = vpack.c.b16 %v1646, %v1645
        %v1652 = vsel %vm956, %v1631, 0
        %1654 = vmatprep.subr.bf16.mxu0 0
        %1655 = vmatpush1.bf16.msra.mxu0 %v1647
        %1656 = vmatprep.subr.bf16.mxu0 0
        %1657 = vmatpush1.bf16.msra.mxu0 %v1648
        %1658 = vmatprep.subr.bf16.mxu0 0
        %1659 = vmatpush1.bf16.msra.mxu0 0
        %1660 = vmatprep.subr.bf16.mxu0 0
        %1661 = vmatpush1.bf16.msra.mxu0 0
        %1662 = vmatprep.subr.bf16.mxu0 0
        %1663 = vmatpush1.bf16.msra.mxu0 0
        %1664 = vmatprep.subr.bf16.mxu0 0
        %1665 = vmatpush1.bf16.msra.mxu0 0
        %1666 = vmatprep.subr.bf16.mxu0 0
        %1667 = vmatpush1.bf16.msra.mxu0 0
        %1668 = vmatprep.subr.bf16.mxu0 0
        %1669 = vmatpush1.bf16.msra.mxu0 0
        %1670 = vmatprep.subr.bf16.mxu0 0
        %1671 = vmatpush1.bf16.msra.mxu0 0
        %1672 = vmatprep.subr.bf16.mxu0 0
        %1673 = vmatpush1.bf16.msra.mxu0 0
        %1674 = vmatprep.subr.bf16.mxu0 0
        %1675 = vmatpush1.bf16.msra.mxu0 0
        %1676 = vmatprep.subr.bf16.mxu0 0
        %1677 = vmatpush1.bf16.msra.mxu0 0
        %1678 = vmatprep.subr.bf16.mxu0 0
        %1679 = vmatpush1.bf16.msra.mxu0 0
        %1680 = vmatprep.subr.bf16.mxu0 0
        %1681 = vmatpush1.bf16.msra.mxu0 0
        %1682 = vmatprep.subr.bf16.mxu0 0
        %1683 = vmatpush1.bf16.msra.mxu0 0
        %1684 = vmatprep.subr.bf16.mxu0 0
        %1685 = vmatpush1.bf16.msra.mxu0 0
        %1686 = vmatprep.mubr.bf16.mxu0 0
        %1687 = vmatmul.mubr.bf16.gmra.mrb[0].mxu0 %v1652
        %v1688 = vpop.f32.mrb[0].mxu0
        %v1689 = vadd.f32 0.0, %v1688
        %v1690 = vpop.f32.mrb[0].mxu0
        %v1691 = vpop.f32.mrb[0].mxu0
        %v1692 = vadd.f32 0.0, %v1691
        %v1693 = vpop.f32.mrb[0].mxu0
        %1694 = vdwg.mxu0
        %v1695 = vadd.f32 %v1508, %v1689
        %v1696 = vadd.f32 %v1509, %v1692
        %s1697 = scalar_lea.vmem %s7, %s43
        %v1698 = vld [vmem:[%s1697] sm:$0x1]
        %v1700 = vlaneseq
        %v1701 = vshrl.u32 %v1700, 7
        %v1702 = vsub.s32 0, %v1701
        %v1703 = vrot.slane %v1698, %v1702
        %v1705 = vadd.f32 %v1695, %v1703
        %v1706 = vadd.f32 %v1696, %v1703
        %v1707 = vadd.f32 %v673, %v1705
        %v1708 = vadd.f32 %v674, %v1706
        %1709 = vadd.xlane.f32.xlu0 %v1707
        %v1710 = vpop.xlane.xlu0 %1709
        %1711 = vadd.xlane.f32.xlu0 %v1708
        %v1712 = vpop.xlane.xlu0 %1711
        %v1713 = vrcp.pop 128.0
        %v1714 = vmul.f32 %v1710, %v1713
        %v1715 = vmul.f32 %v1712, %v1713
        %v1716 = vsub.f32 %v1707, %v1714
        %v1717 = vsub.f32 %v1708, %v1715
        %v1718 = vmul.f32 %v1716, %v1716
        %v1719 = vmul.f32 %v1717, %v1717
        %1720 = vadd.xlane.f32.xlu0 %v1718
        %v1721 = vpop.xlane.xlu0 %1720
        %1722 = vadd.xlane.f32.xlu0 %v1719
        %v1723 = vpop.xlane.xlu0 %1722
        %v1724 = vmul.f32 %v1721, %v1713
        %v1725 = vmul.f32 %v1723, %v1713
        %v1726 = vadd.f32 %v1724, 1e-05
        %v1727 = vadd.f32 %v1725, 1e-05
        %v1728 = vrsqrt.pop %v1726
        %v1729 = vrsqrt.pop %v1727
        %v1730 = vmul.f32 %v1716, %v1728
        %v1731 = vmul.f32 %v1717, %v1729
        %s1732 = scalar_lea.vmem %s12, %s43
        %v1733 = vld [vmem:[%s1732] sm:$0x1]
        %v1735 = vlaneseq
        %v1736 = vshrl.u32 %v1735, 7
        %v1737 = vsub.s32 0, %v1736
        %v1738 = vrot.slane %v1733, %v1737
        %v1740 = vmul.f32 %v1730, %v1738
        %v1741 = vmul.f32 %v1731, %v1738
        %s1742 = scalar_lea.vmem %s13, %s43
        %v1743 = vld [vmem:[%s1742] sm:$0x1]
        %v1745 = vlaneseq
        %v1746 = vshrl.u32 %v1745, 7
        %v1747 = vsub.s32 0, %v1746
        %v1748 = vrot.slane %v1743, %v1747
        %v1750 = vadd.f32 %v1740, %v1748
        %v1751 = vadd.f32 %v1741, %v1748
        %v1752 = vpack.c.bf16 %v1751, %v1750
        %s1753 = smul.addr %s680, 4
        %s1754 = scalar_lea.vmem [#allocation12], %s1753
        %v1755 = vld [vmem:[%s1754] sm:$0xff]
        %v1756 = vld [vmem:[%s1754 + $0x8] sm:$0xff]
        %v1757 = vld [vmem:[%s1754 + $0x10] sm:$0xff]
        %v1758 = vld [vmem:[%s1754 + $0x18] sm:$0xff]
        %v1759 = vld [vmem:[%s1754 + $0x20] sm:$0xff]
        %v1760 = vld [vmem:[%s1754 + $0x28] sm:$0xff]
        %v1761 = vld [vmem:[%s1754 + $0x30] sm:$0xff]
        %v1762 = vld [vmem:[%s1754 + $0x38] sm:$0xff]
        %v1763 = vld [vmem:[%s1754 + $0x40] sm:$0xff]
        %v1764 = vld [vmem:[%s1754 + $0x48] sm:$0xff]
        %v1765 = vld [vmem:[%s1754 + $0x50] sm:$0xff]
        %v1766 = vld [vmem:[%s1754 + $0x58] sm:$0xff]
        %v1767 = vld [vmem:[%s1754 + $0x60] sm:$0xff]
        %v1768 = vld [vmem:[%s1754 + $0x68] sm:$0xff]
        %v1769 = vld [vmem:[%s1754 + $0x70] sm:$0xff]
        %v1770 = vld [vmem:[%s1754 + $0x78] sm:$0xff]
        %s1771 = scalar_lea.vmem %s9, %s699
        %v1772 = vld [vmem:[%s1771] sm:$0x3]
        %v1774 = vlaneseq
        %v1775 = vshrl.u32 %v1774, 7
        %v1776 = vsub.s32 0, %v1775
        %v1777 = vrot.slane %v1772, %v1776
        %v1778 = vlaneseq
        %v1779 = vshrl.u32 %v1778, 7
        %v1780 = vsub.s32 1, %v1779
        %v1781 = vrot.slane %v1772, %v1780
        %v1800 = vunpack.c.l.b16 %v1755
        %v1801 = vunpack.c.h.b16 %v1755
        %v1802 = vunpack.c.l.b16 %v1756
        %v1803 = vunpack.c.h.b16 %v1756
        %v1804 = vunpack.c.l.b16 %v1757
        %v1805 = vunpack.c.h.b16 %v1757
        %v1806 = vunpack.c.l.b16 %v1758
        %v1807 = vunpack.c.h.b16 %v1758
        %v1808 = vunpack.c.l.b16 %v1759
        %v1809 = vunpack.c.h.b16 %v1759
        %v1810 = vunpack.c.l.b16 %v1760
        %v1811 = vunpack.c.h.b16 %v1760
        %v1812 = vunpack.c.l.b16 %v1761
        %v1813 = vunpack.c.h.b16 %v1761
        %v1814 = vunpack.c.l.b16 %v1762
        %v1815 = vunpack.c.h.b16 %v1762
        %v1816 = vunpack.c.l.b16 %v1763
        %v1817 = vunpack.c.h.b16 %v1763
        %v1818 = vunpack.c.l.b16 %v1764
        %v1819 = vunpack.c.h.b16 %v1764
        %v1820 = vunpack.c.l.b16 %v1765
        %v1821 = vunpack.c.h.b16 %v1765
        %v1822 = vunpack.c.l.b16 %v1766
        %v1823 = vunpack.c.h.b16 %v1766
        %v1824 = vunpack.c.l.b16 %v1767
        %v1825 = vunpack.c.h.b16 %v1767
        %v1826 = vunpack.c.l.b16 %v1768
        %v1827 = vunpack.c.h.b16 %v1768
        %v1828 = vunpack.c.l.b16 %v1769
        %v1829 = vunpack.c.h.b16 %v1769
        %v1830 = vunpack.c.l.b16 %v1770
        %v1831 = vunpack.c.h.b16 %v1770
        %v1832 = vpack.c.b16 %v1802, %v1800
        %v1833 = vpack.c.b16 %v1803, %v1801
        %v1834 = vpack.c.b16 %v1806, %v1804
        %v1835 = vpack.c.b16 %v1807, %v1805
        %v1836 = vpack.c.b16 %v1810, %v1808
        %v1837 = vpack.c.b16 %v1811, %v1809
        %v1838 = vpack.c.b16 %v1814, %v1812
        %v1839 = vpack.c.b16 %v1815, %v1813
        %v1840 = vpack.c.b16 %v1818, %v1816
        %v1841 = vpack.c.b16 %v1819, %v1817
        %v1842 = vpack.c.b16 %v1822, %v1820
        %v1843 = vpack.c.b16 %v1823, %v1821
        %v1844 = vpack.c.b16 %v1826, %v1824
        %v1845 = vpack.c.b16 %v1827, %v1825
        %v1846 = vpack.c.b16 %v1830, %v1828
        %v1847 = vpack.c.b16 %v1831, %v1829
        %1864 = vmatprep.subr.bf16.mxu0 %v1833
        %1865 = vmatpush1.bf16.msra.mxu0 %v1832
        %1866 = vmatprep.subr.bf16.mxu0 %v1835
        %1867 = vmatpush1.bf16.msra.mxu0 %v1834
        %1868 = vmatprep.subr.bf16.mxu0 %v1837
        %1869 = vmatpush1.bf16.msra.mxu0 %v1836
        %1870 = vmatprep.subr.bf16.mxu0 %v1839
        %1871 = vmatpush1.bf16.msra.mxu0 %v1838
        %1872 = vmatprep.subr.bf16.mxu0 %v1841
        %1873 = vmatpush1.bf16.msra.mxu0 %v1840
        %1874 = vmatprep.subr.bf16.mxu0 %v1843
        %1875 = vmatpush1.bf16.msra.mxu0 %v1842
        %1876 = vmatprep.subr.bf16.mxu0 %v1845
        %1877 = vmatpush1.bf16.msra.mxu0 %v1844
        %1878 = vmatprep.subr.bf16.mxu0 %v1847
        %1879 = vmatpush1.bf16.msra.mxu0 %v1846
        %1880 = vmatprep.subr.bf16.mxu0 0
        %1881 = vmatpush1.bf16.msra.mxu0 0
        %1882 = vmatprep.subr.bf16.mxu0 0
        %1883 = vmatpush1.bf16.msra.mxu0 0
        %1884 = vmatprep.subr.bf16.mxu0 0
        %1885 = vmatpush1.bf16.msra.mxu0 0
        %1886 = vmatprep.subr.bf16.mxu0 0
        %1887 = vmatpush1.bf16.msra.mxu0 0
        %1888 = vmatprep.subr.bf16.mxu0 0
        %1889 = vmatpush1.bf16.msra.mxu0 0
        %1890 = vmatprep.subr.bf16.mxu0 0
        %1891 = vmatpush1.bf16.msra.mxu0 0
        %1892 = vmatprep.subr.bf16.mxu0 0
        %1893 = vmatpush1.bf16.msra.mxu0 0
        %1894 = vmatprep.subr.bf16.mxu0 0
        %1895 = vmatpush1.bf16.msra.mxu0 0
        %1896 = vmatprep.mubr.bf16.mxu0 0
        %1897 = vmatmul.mubr.bf16.gmra.mrb[0].mxu0 %v1752
        %v1898 = vpop.f32.mrb[0].mxu0
        %v1899 = vadd.f32 %v1777, %v1898
        %v1900 = vpop.f32.mrb[0].mxu0
        %v1901 = vadd.f32 %v1781, %v1900
        %v1902 = vpop.f32.mrb[0].mxu0
        %v1903 = vadd.f32 %v1777, %v1902
        %v1904 = vpop.f32.mrb[0].mxu0
        %v1905 = vadd.f32 %v1781, %v1904
        %1906 = vdwg.mxu0
        %v1907 = vmax.f32 %v1899, 0.0
        %v1908 = vmax.f32 %v1901, 0.0
        %v1909 = vmax.f32 %v1903, 0.0
        %v1910 = vmax.f32 %v1905, 0.0
        %v1911 = vpack.c.bf16 %v1909, %v1907
        %v1912 = vpack.c.bf16 %v1910, %v1908
        %s1913 = smul.addr %s680, 4
        %s1914 = scalar_lea.vmem [#allocation14], %s1913
        %v1915 = vld [vmem:[%s1914] sm:$0xf]
        %v1916 = vld [vmem:[%s1914 + $0x4] sm:$0xf]
        %v1917 = vld [vmem:[%s1914 + $0x8] sm:$0xf]
        %v1918 = vld [vmem:[%s1914 + $0xc] sm:$0xf]
        %v1919 = vld [vmem:[%s1914 + $0x10] sm:$0xf]
        %v1920 = vld [vmem:[%s1914 + $0x14] sm:$0xf]
        %v1921 = vld [vmem:[%s1914 + $0x18] sm:$0xf]
        %v1922 = vld [vmem:[%s1914 + $0x1c] sm:$0xf]
        %v1923 = vld [vmem:[%s1914 + $0x20] sm:$0xf]
        %v1924 = vld [vmem:[%s1914 + $0x24] sm:$0xf]
        %v1925 = vld [vmem:[%s1914 + $0x28] sm:$0xf]
        %v1926 = vld [vmem:[%s1914 + $0x2c] sm:$0xf]
        %v1927 = vld [vmem:[%s1914 + $0x30] sm:$0xf]
        %v1928 = vld [vmem:[%s1914 + $0x34] sm:$0xf]
        %v1929 = vld [vmem:[%s1914 + $0x38] sm:$0xf]
        %v1930 = vld [vmem:[%s1914 + $0x3c] sm:$0xf]
        %v1931 = vld [vmem:[%s1914 + $0x40] sm:$0xf]
        %v1932 = vld [vmem:[%s1914 + $0x44] sm:$0xf]
        %v1933 = vld [vmem:[%s1914 + $0x48] sm:$0xf]
        %v1934 = vld [vmem:[%s1914 + $0x4c] sm:$0xf]
        %v1935 = vld [vmem:[%s1914 + $0x50] sm:$0xf]
        %v1936 = vld [vmem:[%s1914 + $0x54] sm:$0xf]
        %v1937 = vld [vmem:[%s1914 + $0x58] sm:$0xf]
        %v1938 = vld [vmem:[%s1914 + $0x5c] sm:$0xf]
        %v1939 = vld [vmem:[%s1914 + $0x60] sm:$0xf]
        %v1940 = vld [vmem:[%s1914 + $0x64] sm:$0xf]
        %v1941 = vld [vmem:[%s1914 + $0x68] sm:$0xf]
        %v1942 = vld [vmem:[%s1914 + $0x6c] sm:$0xf]
        %v1943 = vld [vmem:[%s1914 + $0x70] sm:$0xf]
        %v1944 = vld [vmem:[%s1914 + $0x74] sm:$0xf]
        %v1945 = vld [vmem:[%s1914 + $0x78] sm:$0xf]
        %v1946 = vld [vmem:[%s1914 + $0x7c] sm:$0xf]
        %s1947 = scalar_lea.vmem %s11, %s43
        %v1948 = vld [vmem:[%s1947] sm:$0x1]
        %v1950 = vlaneseq
        %v1951 = vshrl.u32 %v1950, 7
        %v1952 = vsub.s32 0, %v1951
        %v1953 = vrot.slane %v1948, %v1952
        %v1987 = vunpack.c.l.b16 %v1915
        %v1988 = vunpack.c.l.b16 %v1916
        %v1989 = vunpack.c.l.b16 %v1917
        %v1990 = vunpack.c.l.b16 %v1918
        %v1991 = vunpack.c.l.b16 %v1919
        %v1992 = vunpack.c.l.b16 %v1920
        %v1993 = vunpack.c.l.b16 %v1921
        %v1994 = vunpack.c.l.b16 %v1922
        %v1995 = vunpack.c.l.b16 %v1923
        %v1996 = vunpack.c.l.b16 %v1924
        %v1997 = vunpack.c.l.b16 %v1925
        %v1998 = vunpack.c.l.b16 %v1926
        %v1999 = vunpack.c.l.b16 %v1927
        %v2000 = vunpack.c.l.b16 %v1928
        %v2001 = vunpack.c.l.b16 %v1929
        %v2002 = vunpack.c.l.b16 %v1930
        %v2003 = vunpack.c.l.b16 %v1931
        %v2004 = vunpack.c.l.b16 %v1932
        %v2005 = vunpack.c.l.b16 %v1933
        %v2006 = vunpack.c.l.b16 %v1934
        %v2007 = vunpack.c.l.b16 %v1935
        %v2008 = vunpack.c.l.b16 %v1936
        %v2009 = vunpack.c.l.b16 %v1937
        %v2010 = vunpack.c.l.b16 %v1938
        %v2011 = vunpack.c.l.b16 %v1939
        %v2012 = vunpack.c.l.b16 %v1940
        %v2013 = vunpack.c.l.b16 %v1941
        %v2014 = vunpack.c.l.b16 %v1942
        %v2015 = vunpack.c.l.b16 %v1943
        %v2016 = vunpack.c.l.b16 %v1944
        %v2017 = vunpack.c.l.b16 %v1945
        %v2018 = vunpack.c.l.b16 %v1946
        %v2019 = vpack.c.b16 %v1988, %v1987
        %v2020 = vpack.c.b16 %v1990, %v1989
        %v2021 = vpack.c.b16 %v1992, %v1991
        %v2022 = vpack.c.b16 %v1994, %v1993
        %v2023 = vpack.c.b16 %v1996, %v1995
        %v2024 = vpack.c.b16 %v1998, %v1997
        %v2025 = vpack.c.b16 %v2000, %v1999
        %v2026 = vpack.c.b16 %v2002, %v2001
        %v2027 = vpack.c.b16 %v2004, %v2003
        %v2028 = vpack.c.b16 %v2006, %v2005
        %v2029 = vpack.c.b16 %v2008, %v2007
        %v2030 = vpack.c.b16 %v2010, %v2009
        %v2031 = vpack.c.b16 %v2012, %v2011
        %v2032 = vpack.c.b16 %v2014, %v2013
        %v2033 = vpack.c.b16 %v2016, %v2015
        %v2034 = vpack.c.b16 %v2018, %v2017
        %2051 = vmatprep.subr.bf16.mxu0 0
        %2052 = vmatpush1.bf16.msra.mxu0 %v2019
        %2053 = vmatprep.subr.bf16.mxu0 0
        %2054 = vmatpush1.bf16.msra.mxu0 %v2020
        %2055 = vmatprep.subr.bf16.mxu0 0
        %2056 = vmatpush1.bf16.msra.mxu0 %v2021
        %2057 = vmatprep.subr.bf16.mxu0 0
        %2058 = vmatpush1.bf16.msra.mxu0 %v2022
        %2059 = vmatprep.subr.bf16.mxu0 0
        %2060 = vmatpush1.bf16.msra.mxu0 %v2023
        %2061 = vmatprep.subr.bf16.mxu0 0
        %2062 = vmatpush1.bf16.msra.mxu0 %v2024
        %2063 = vmatprep.subr.bf16.mxu0 0
        %2064 = vmatpush1.bf16.msra.mxu0 %v2025
        %2065 = vmatprep.subr.bf16.mxu0 0
        %2066 = vmatpush1.bf16.msra.mxu0 %v2026
        %2067 = vmatprep.subr.bf16.mxu0 0
        %2068 = vmatpush1.bf16.msra.mxu0 %v2027
        %2069 = vmatprep.subr.bf16.mxu0 0
        %2070 = vmatpush1.bf16.msra.mxu0 %v2028
        %2071 = vmatprep.subr.bf16.mxu0 0
        %2072 = vmatpush1.bf16.msra.mxu0 %v2029
        %2073 = vmatprep.subr.bf16.mxu0 0
        %2074 = vmatpush1.bf16.msra.mxu0 %v2030
        %2075 = vmatprep.subr.bf16.mxu0 0
        %2076 = vmatpush1.bf16.msra.mxu0 %v2031
        %2077 = vmatprep.subr.bf16.mxu0 0
        %2078 = vmatpush1.bf16.msra.mxu0 %v2032
        %2079 = vmatprep.subr.bf16.mxu0 0
        %2080 = vmatpush1.bf16.msra.mxu0 %v2033
        %2081 = vmatprep.subr.bf16.mxu0 0
        %2082 = vmatpush1.bf16.msra.mxu0 %v2034
        %2083 = vmatprep.mubr.bf16.mxu0 %v1912
        %2084 = vmatmul.mubr.bf16.gmra.mrb[0].mxu0 %v1911
        %v2085 = vpop.f32.mrb[0].mxu0
        %v2086 = vadd.f32 %v1953, %v2085
        %v2087 = vpop.f32.mrb[0].mxu0
        %v2088 = vpop.f32.mrb[0].mxu0
        %v2089 = vadd.f32 %v1953, %v2088
        %v2090 = vpop.f32.mrb[0].mxu0
        %2091 = vdwg.mxu0
        %v2092 = vadd.f32 %v1750, %v2086
        %v2093 = vadd.f32 %v1751, %v2089
        %2094 = vadd.xlane.f32.xlu0 %v2092
        %v2095 = vpop.xlane.xlu0 %2094
        %2096 = vadd.xlane.f32.xlu0 %v2093
        %v2097 = vpop.xlane.xlu0 %2096
        %v2098 = vmul.f32 %v2095, %v1713
        %v2099 = vmul.f32 %v2097, %v1713
        %v2100 = vsub.f32 %v2092, %v2098
        %v2101 = vsub.f32 %v2093, %v2099
        %v2102 = vmul.f32 %v2100, %v2100
        %v2103 = vmul.f32 %v2101, %v2101
        %2104 = vadd.xlane.f32.xlu0 %v2102
        %v2105 = vpop.xlane.xlu0 %2104
        %2106 = vadd.xlane.f32.xlu0 %v2103
        %v2107 = vpop.xlane.xlu0 %2106
        %v2108 = vmul.f32 %v2105, %v1713
        %v2109 = vmul.f32 %v2107, %v1713
        %v2110 = vadd.f32 %v2108, 1e-05
        %v2111 = vadd.f32 %v2109, 1e-05
        %v2112 = vrsqrt.pop %v2110
        %v2113 = vrsqrt.pop %v2111
        %v2114 = vmul.f32 %v2100, %v2112
        %v2115 = vmul.f32 %v2101, %v2113
        %s2116 = scalar_lea.vmem %s14, %s43
        %v2117 = vld [vmem:[%s2116] sm:$0x1]
        %v2119 = vlaneseq
        %v2120 = vshrl.u32 %v2119, 7
        %v2121 = vsub.s32 0, %v2120
        %v2122 = vrot.slane %v2117, %v2121
        %v2124 = vmul.f32 %v2114, %v2122
        %v2125 = vmul.f32 %v2115, %v2122
        %s2126 = scalar_lea.vmem %s15, %s43
        %v2127 = vld [vmem:[%s2126] sm:$0x1]
        %v2129 = vlaneseq
        %v2130 = vshrl.u32 %v2129, 7
        %v2131 = vsub.s32 0, %v2130
        %v2132 = vrot.slane %v2127, %v2131
        %v2134 = vadd.f32 %v2124, %v2132
        %v2135 = vadd.f32 %v2125, %v2132
        %p2136 = scmp.lt.s32.totalorder %s43, 1
        // Predicated region
        $region117: #{tpu_custom_call.1} parent=83 // pred_check
          %p2137 = pneg %p2136
        $region118: #{tpu_custom_call.1} parent=83 // pred_check_branch
          %2139 = sbr.rel (%p2137) target = $region120
        $region119: #{tpu_custom_call.1} parent=83 // pred_region
          %2140 = vst [vmem:[#allocation2] sm:$0xff] %v2134
          %2141 = vst [vmem:[#allocation2 + $0x8] sm:$0xff] %v2135
        $region120: #{tpu_custom_call.1} parent=83 // pred_fallthru
          _
        %p2142 = scmp.eq.s32.totalorder %s43, 1
        // Predicated region
        $region121: #{tpu_custom_call.1} parent=83 // pred_check
          %p2143 = pneg %p2142
        $region122: #{tpu_custom_call.1} parent=83 // pred_check_branch
          %2145 = sbr.rel (%p2143) target = $region124
        $region123: #{tpu_custom_call.1} parent=83 // pred_region
          %2146 = vst [vmem:[%s663] sm:$0xff] %v2134
          %2147 = vst [vmem:[%s663 + $0x8] sm:$0xff] %v2135
        $region124: #{tpu_custom_call.1} parent=83 // pred_fallthru
          _
        %s2148 = sand.u32 %s404, 1
        %s2149 = scalar_lea.sflag [#allocation5], %s2148
        %s2150 = sand.u32 %s404, 1
        %s2151 = smul.addr %s2150, 16
        %s2152 = scalar_lea.vmem [#allocation15], %s2151
        // Predicated region
        $region125: #{tpu_custom_call.1} parent=83 // pred_check
          %p2153 = pneg %p414
        $region126: #{tpu_custom_call.1} parent=83 // pred_check_branch
          %2155 = sbr.rel (%p2153) target = $region128
        $region127: #{tpu_custom_call.1} parent=83 // pred_region
          %s2157 = ssub.s32 256, 256
          %2158 = vsyncadd %s2149, %s2157
          %s2159 = smul.addr %s42, 2
          %s2160 = smul.addr %s2159, 128
          %s2161 = scalar_lea.hbm %s16, %s2160
          %s2162 = sshll.u32 %s2152, 4
          %s2163 = int_to_ptr.vmem [resolvable:$true] %s2162
          %2168 = dma.vmem_to_hbm [thread:$0]  %s2163, 256, %s2161, %s2149, 128, 128, 8
        $region128: #{tpu_custom_call.1} parent=83 // pred_fallthru
          _
      $region84: #{tpu_custom_call.1} parent=5 // pred_fallthru
        _
      %p2169 = scmp.le.s32.totalorder 2, %s33
      // Predicated region
      $region129: #{tpu_custom_call.1} parent=5 // pred_check
        %p2170 = pneg %p2169
      $region130: #{tpu_custom_call.1} parent=5 // pred_check_branch
        %2172 = sbr.rel (%p2170) target = $region132
      $region131: #{tpu_custom_call.1} parent=5 // pred_region
        %s2173 = ssub.s32 %s33, 2
        // Predicated region
        $region133: #{tpu_custom_call.1} parent=131 // pred_check
          %p2174 = pneg %p420
        $region134: #{tpu_custom_call.1} parent=131 // pred_check_branch
          %2176 = sbr.rel (%p2174) target = $region136
        $region135: #{tpu_custom_call.1} parent=131 // pred_region
          %s2177 = sand.u32 %s405, 1
          %s2178 = scalar_lea.sflag [#allocation5], %s2177
          %s2179 = sand.u32 %s405, 1
          %s2180 = smul.addr %s2179, 16
          %s2181 = scalar_lea.vmem [#allocation15], %s2180
          %2182 = dma.done %s2178, 256
        $region136: #{tpu_custom_call.1} parent=131 // pred_fallthru
          _
      $region132: #{tpu_custom_call.1} parent=5 // pred_fallthru
        _
    $region6: #{tpu_custom_call.1} parent=1 // loop_footer
      %s37 = sadd.s32 1, %s33
    $region7: #{tpu_custom_call.1} parent=1 // loop_footer_branch
      %32 = sbr.rel target = $region3
    $region8: #{tpu_custom_call.1} parent=1 // loop_exit
      _
    %2183 = vsyncpa [#allocation4], 1
    %s2184 = scalar_lea.sflag [#allocation4], 1
    %2185 = vsyncpa %s2184, 1
    %2186 = vsyncpa [#allocation7], 1
    %s2187 = scalar_lea.sflag [#allocation7], 1
    %2188 = vsyncpa %s2187, 1
    %2189 = vsyncpa [#allocation10], 1
    %2190 = vsyncpa [#allocation13], 1
    %2191 = vsyncpa [#allocation5], 1
    %s2192 = scalar_lea.sflag [#allocation5], 1
    %2193 = vsyncpa %s2192, 1

</llo_original>
